<compile_context>
chip_gen: v5e
topology: v5e:2x2
jax: 0.10.0
libtpu: 0.0.40
codegen_flags: <defaults>
</compile_context>

<pallas_src>
import math
import numpy as np
import jax
import jax.numpy as jnp
from jax.experimental import pallas as pl
from jax.experimental.pallas import tpu as pltpu

# ---------------- problem configuration (small, consistent with the module) --
B = 2            # batch
C = 32           # channels (embed_dim)
H = W = 16       # spatial
R = 4            # reduction_ratio (conv kernel == stride)
NUM_HEADS = 4
HEAD_DIM = C // NUM_HEADS
N = H * W                    # query sequence length (256)
HR, WR = H // R, W // R
M = HR * WR                  # key/value sequence length (16)
K_PATCH = C * R * R          # flattened patch size (512)
LN_EPS = 1e-5


# ----------------------------- fused Pallas kernel ---------------------------
def fused_attention_kernel(x_ref, patch_ref, wred_ref, wall_ref, bias_ref, out_ref):
    # x_ref:     (1, C, N)        queries, channel-major (lane dim = N, dense)
    # patch_ref: (1, M, K_PATCH)  im2col conv patches, lane-dense (lane dim = K_PATCH)
    # wred_ref:  (C, K_PATCH)     Conv2d weight, OIHW flattened
    # wall_ref:  (4C, C)          stacked [Wq*scale ; Wk ; Wv ; Wo]
    # bias_ref:  (7C, 1)          stacked [conv_b ; ln_g ; ln_b ; bq*scale ; bk ; bv ; bo]
    x_t = x_ref[0]               # (C, N)
    p = patch_ref[0]             # (M, K_PATCH)

    b_red = bias_ref[0 * C:1 * C]        # (C, 1)
    g     = bias_ref[1 * C:2 * C]
    beta  = bias_ref[2 * C:3 * C]
    bq    = bias_ref[3 * C:4 * C]
    b_kv  = bias_ref[4 * C:6 * C]        # (2C, 1)
    bo    = bias_ref[6 * C:7 * C]

    # ---- reducer: Conv2d(k=R, s=R) as one patch matmul + LayerNorm over channels.
    y = jnp.einsum("ck,mk->cm", wred_ref[...], p,
                   preferred_element_type=jnp.float32) + b_red             # (C, M)
    mean = jnp.mean(y, axis=0, keepdims=True)                               # (1, M)
    var = jnp.mean((y - mean) ** 2, axis=0, keepdims=True)                  # (1, M)
    kv_t = (y - mean) * jax.lax.rsqrt(var + LN_EPS) * g + beta              # (C, M)

    # ---- merged projections: one Q matmul, one stacked [K;V] matmul.
    wq   = wall_ref[0:C]                 # (C, C)  (1/sqrt(Dh) folded in)
    w_kv = wall_ref[C:3 * C]             # (2C, C)
    wo   = wall_ref[3 * C:4 * C]         # (C, C)

    q_full = jnp.dot(wq, x_t, preferred_element_type=jnp.float32) + bq          # (C, N)
    kv_proj = jnp.dot(w_kv, kv_t, preferred_element_type=jnp.float32) + b_kv    # (2C, M)
    k_full = kv_proj[0:C]                # (C, M)
    v_full = kv_proj[C:2 * C]            # (C, M)

    # ---- per-head views: Dh = 8 = one f32 sublane tile -> aligned, free splits.
    q_h = q_full.reshape(NUM_HEADS, HEAD_DIM, N)
    k_h = k_full.reshape(NUM_HEADS, HEAD_DIM, M)
    v_h = v_full.reshape(NUM_HEADS, HEAD_DIM, M)

    # ---- scores + softmax batched over all heads (scale already in Wq/bq).
    s = jnp.einsum("hdm,hdn->hmn", k_h, q_h,
                   preferred_element_type=jnp.float32)                      # (NH, M, N)
    s = s - jnp.max(s, axis=1, keepdims=True)
    e = jnp.exp(s)
    p_attn = e * (1.0 / jnp.sum(e, axis=1, keepdims=True))                  # exact recip

    # ---- per-head PV, heads concatenated along sublanes, one dense Wo matmul.
    o_h = jnp.einsum("hdm,hmn->hdn", v_h, p_attn,
                     preferred_element_type=jnp.float32)                    # (NH, Dh, N)
    o_full = o_h.reshape(C, N)

    out_ref[0] = jnp.dot(wo, o_full, preferred_element_type=jnp.float32) + bo   # lane-dense


# ----------------------------- wrapper ---------------------------------------
def _fused_call(x_cn, patches, w_red, w_all, bias_all):
    return pl.pallas_call(
        fused_attention_kernel,
        out_shape=jax.ShapeDtypeStruct((B, C, N), jnp.float32),
        grid_spec=pltpu.PrefetchScalarGridSpec(
            num_scalar_prefetch=0,
            grid=(B,),
            in_specs=[
                pl.BlockSpec((1, C, N), lambda b: (b, 0, 0)),
                pl.BlockSpec((1, M, K_PATCH), lambda b: (b, 0, 0)),
                pl.BlockSpec((C, K_PATCH), lambda b: (0, 0)),
                pl.BlockSpec((4 * C, C), lambda b: (0, 0)),
                pl.BlockSpec((7 * C, 1), lambda b: (0, 0)),
            ],
            out_specs=pl.BlockSpec((1, C, N), lambda b: (b, 0, 0)),
        ),
        compiler_params=pltpu.CompilerParams(dimension_semantics=("parallel",)),
    )(x_cn, patches, w_red, w_all, bias_all)


def prepare_params(params):
    """One-time weight/bias prep, hoisted OUT of the per-call jitted forward."""
    scale = 1.0 / math.sqrt(HEAD_DIM)
    w_red = params["conv_w"].reshape(C, K_PATCH)                       # OIHW flatten
    w_all = jnp.concatenate(
        [params["wq"] * scale, params["wk"], params["wv"], params["wo"]], axis=0)
    bias_all = jnp.concatenate(
        [params["conv_b"], params["ln_g"], params["ln_b"],
         params["bq"] * scale, params["bk"], params["bv"], params["bo"]],
        axis=0).reshape(7 * C, 1)
    return {"w_red": w_red, "w_all": w_all, "bias_all": bias_all}


@jax.jit
def efficient_self_attention(x, prepped):
    """x: (B, C, H, W) NCHW; matches the PyTorch module's forward."""
    x_cn = x.reshape(B, C, N)                                  # free: NCHW -> (B, C, N)
    patches = (x.reshape(B, C, HR, R, WR, R)
                 .transpose(0, 2, 4, 1, 3, 5)                  # (B, HR, WR, C, R, R)
                 .reshape(B, M, K_PATCH))                      # lane-dense im2col
    out_cn = _fused_call(x_cn, patches,
                         prepped["w_red"], prepped["w_all"], prepped["bias_all"])
    return out_cn.reshape(B, C, H, W)                          # free: -> NCHW


# ----------------------------- pure-JAX reference -----------------------------
def reference(x, params):
    hp = jax.lax.Precision.HIGHEST   # avoid XLA's default bf16 demotion of f32 matmuls
    y = jax.lax.conv_general_dilated(
        x, params["conv_w"], window_strides=(R, R), padding="VALID",
        dimension_numbers=("NCHW", "OIHW", "NCHW"), precision=hp)
    y = y + params["conv_b"][None, :, None, None]
    yt = jnp.transpose(y, (0, 2, 3, 1))                        # (B, HR, WR, C)
    mean = jnp.mean(yt, axis=-1, keepdims=True)
    var = jnp.mean((yt - mean) ** 2, axis=-1, keepdims=True)
    yt = (yt - mean) / jnp.sqrt(var + LN_EPS) * params["ln_g"] + params["ln_b"]
    kv = yt.reshape(B, M, C)
    xs = x.transpose(0, 2, 3, 1).reshape(B, N, C)

    q = jnp.einsum("bnc,dc->bnd", xs, params["wq"], precision=hp) + params["bq"]
    k = jnp.einsum("bmc,dc->bmd", kv, params["wk"], precision=hp) + params["bk"]
    v = jnp.einsum("bmc,dc->bmd", kv, params["wv"], precision=hp) + params["bv"]
    q = q.reshape(B, N, NUM_HEADS, HEAD_DIM).transpose(0, 2, 1, 3)
    k = k.reshape(B, M, NUM_HEADS, HEAD_DIM).transpose(0, 2, 1, 3)
    v = v.reshape(B, M, NUM_HEADS, HEAD_DIM).transpose(0, 2, 1, 3)
    s = jnp.einsum("bhnd,bhmd->bhnm", q, k, precision=hp) / math.sqrt(HEAD_DIM)
    p = jax.nn.softmax(s, axis=-1)
    o = jnp.einsum("bhnm,bhmd->bhnd", p, v, precision=hp)
    o = o.transpose(0, 2, 1, 3).reshape(B, N, C)
    o = jnp.einsum("bnc,dc->bnd", o, params["wo"], precision=hp) + params["bo"]
    return o.reshape(B, H, W, C).transpose(0, 3, 1, 2)


# ----------------------------- main -------------------------------------------
if __name__ == "__main__":
    key = jax.random.PRNGKey(0)
    keys = jax.random.split(key, 11)

    # Deterministic synthetic parameters (shapes from the module's __init__).
    params = {
        "conv_w": 0.05 * jax.random.normal(keys[0], (C, C, R, R), jnp.float32),  # OIHW
        "conv_b": 0.05 * jax.random.normal(keys[1], (C,), jnp.float32),
        "ln_g":   1.0 + 0.05 * jax.random.normal(keys[2], (C,), jnp.float32),
        "ln_b":   0.05 * jax.random.normal(keys[3], (C,), jnp.float32),
        # nn.MultiheadAttention: in_proj (3C, C) split into q/k/v, out_proj (C, C)
        "wq": 0.05 * jax.random.normal(keys[4], (C, C), jnp.float32),
        "wk": 0.05 * jax.random.normal(keys[5], (C, C), jnp.float32),
        "wv": 0.05 * jax.random.normal(keys[6], (C, C), jnp.float32),
        "wo": 0.05 * jax.random.normal(keys[7], (C, C), jnp.float32),
        "bq": 0.05 * jax.random.normal(keys[8], (C,), jnp.float32),
        "bk": jnp.zeros((C,), jnp.float32),
        "bv": jnp.zeros((C,), jnp.float32),
        "bo": 0.05 * jax.random.normal(keys[9], (C,), jnp.float32),
    }

    x = jax.random.normal(keys[10], (B, C, H, W), jnp.float32)

    prepped = prepare_params(params)            # one-time, outside the jitted forward
    out = jax.block_until_ready(efficient_self_attention(x, prepped))

    ref = reference(x, params)
    assert out.shape == (B, C, H, W)
    np.testing.assert_allclose(np.asarray(out), np.asarray(ref), rtol=1e-4, atol=1e-4)

    print("KERNEL_OK")
</pallas_src>

<mosaic_0001>
module attributes {stable_mosaic.version = 11 : i64} {
  func.func @fused_attention_kernel(%arg0: i32, %arg1: memref<1x32x256xf32, #tpu.memory_space<vmem>>, %arg2: memref<1x16x512xf32, #tpu.memory_space<vmem>>, %arg3: memref<32x512xf32, #tpu.memory_space<vmem>>, %arg4: memref<128x32xf32, #tpu.memory_space<vmem>>, %arg5: memref<224x1xf32, #tpu.memory_space<vmem>>, %arg6: memref<1x32x256xf32, #tpu.memory_space<vmem>>) attributes {dimension_semantics = [#tpu.dimension_semantics<parallel>], iteration_bounds = array<i64: 2>, scalar_prefetch = 0 : i64, scratch_operands = 0 : i64, tpu.core_type = #tpu.core_type<tc>, window_params = [{transform_indices = @transform_0, window_bounds = array<i64: 1, 32, 256>}, {transform_indices = @transform_1, window_bounds = array<i64: 1, 16, 512>}, {pipeline_mode = #tpu.pipeline_mode<synchronous>, transform_indices = @transform_2, window_bounds = array<i64: 32, 512>}, {pipeline_mode = #tpu.pipeline_mode<synchronous>, transform_indices = @transform_3, window_bounds = array<i64: 128, 32>}, {pipeline_mode = #tpu.pipeline_mode<synchronous>, transform_indices = @transform_4, window_bounds = array<i64: 224, 1>}, {transform_indices = @transform_5, window_bounds = array<i64: 1, 32, 256>}]} {
    %c0 = arith.constant 0 : index
    %c0_0 = arith.constant 0 : index
    %c0_1 = arith.constant 0 : index
    %0 = vector.load %arg1[%c0, %c0_0, %c0_1] : memref<1x32x256xf32, #tpu.memory_space<vmem>>, vector<1x32x256xf32>
    %1 = vector.shape_cast %0 : vector<1x32x256xf32> to vector<32x256xf32>
    %c0_2 = arith.constant 0 : index
    %c0_3 = arith.constant 0 : index
    %c0_4 = arith.constant 0 : index
    %2 = vector.load %arg2[%c0_2, %c0_3, %c0_4] : memref<1x16x512xf32, #tpu.memory_space<vmem>>, vector<1x16x512xf32>
    %3 = vector.shape_cast %2 : vector<1x16x512xf32> to vector<16x512xf32>
    %c0_5 = arith.constant 0 : index
    %c0_6 = arith.constant 0 : index
    %4 = vector.load %arg5[%c0_5, %c0_6] : memref<224x1xf32, #tpu.memory_space<vmem>>, vector<32x1xf32>
    %c32 = arith.constant 32 : index
    %c0_7 = arith.constant 0 : index
    %5 = vector.load %arg5[%c32, %c0_7] : memref<224x1xf32, #tpu.memory_space<vmem>>, vector<32x1xf32>
    %c64 = arith.constant 64 : index
    %c0_8 = arith.constant 0 : index
    %6 = vector.load %arg5[%c64, %c0_8] : memref<224x1xf32, #tpu.memory_space<vmem>>, vector<32x1xf32>
    %c96 = arith.constant 96 : index
    %c0_9 = arith.constant 0 : index
    %7 = vector.load %arg5[%c96, %c0_9] : memref<224x1xf32, #tpu.memory_space<vmem>>, vector<32x1xf32>
    %c128 = arith.constant 128 : index
    %c0_10 = arith.constant 0 : index
    %8 = vector.load %arg5[%c128, %c0_10] : memref<224x1xf32, #tpu.memory_space<vmem>>, vector<64x1xf32>
    %c192 = arith.constant 192 : index
    %c0_11 = arith.constant 0 : index
    %9 = vector.load %arg5[%c192, %c0_11] : memref<224x1xf32, #tpu.memory_space<vmem>>, vector<32x1xf32>
    %c0_12 = arith.constant 0 : index
    %c0_13 = arith.constant 0 : index
    %10 = vector.load %arg3[%c0_12, %c0_13] : memref<32x512xf32, #tpu.memory_space<vmem>>, vector<32x512xf32>
    "tpu.trace_start"() <{level = 10 : i32, message = "ck,mk->cm"}> : () -> ()
    %cst = arith.constant dense<0.000000e+00> : vector<32x16xf32>
    %11 = tpu.matmul %10, %3, %cst {dimension_numbers = #tpu.dot_dimension_numbers<[1], [1], [0], [0], [0, 0, 1, 0], [], []>} : vector<32x512xf32>, vector<16x512xf32>, vector<32x16xf32> -> vector<32x16xf32>
    "tpu.trace_stop"() : () -> ()
    %12 = vector.broadcast %4 : vector<32x1xf32> to vector<32x16xf32>
    %13 = arith.addf %11, %12 : vector<32x16xf32>
    %cst_14 = arith.constant dense<0.000000e+00> : vector<16xf32>
    %14 = vector.multi_reduction <add>, %13, %cst_14 [0] : vector<32x16xf32> to vector<16xf32>
    %15 = vector.shape_cast %14 : vector<16xf32> to vector<1x16xf32>
    %cst_15 = arith.constant 3.200000e+01 : f32
    %16 = vector.broadcast %cst_15 : f32 to vector<1x16xf32>
    %17 = arith.divf %15, %16 : vector<1x16xf32>
    %18 = vector.broadcast %17 : vector<1x16xf32> to vector<32x16xf32>
    %19 = arith.subf %13, %18 : vector<32x16xf32>
    %20 = arith.mulf %19, %19 : vector<32x16xf32>
    %cst_16 = arith.constant dense<0.000000e+00> : vector<16xf32>
    %21 = vector.multi_reduction <add>, %20, %cst_16 [0] : vector<32x16xf32> to vector<16xf32>
    %22 = vector.shape_cast %21 : vector<16xf32> to vector<1x16xf32>
    %cst_17 = arith.constant 3.200000e+01 : f32
    %23 = vector.broadcast %cst_17 : f32 to vector<1x16xf32>
    %24 = arith.divf %22, %23 : vector<1x16xf32>
    %25 = vector.broadcast %17 : vector<1x16xf32> to vector<32x16xf32>
    %26 = arith.subf %13, %25 : vector<32x16xf32>
    %cst_18 = arith.constant 9.99999974E-6 : f32
    %27 = vector.broadcast %cst_18 : f32 to vector<1x16xf32>
    %28 = arith.addf %24, %27 : vector<1x16xf32>
    %29 = math.rsqrt %28 : vector<1x16xf32>
    %30 = vector.broadcast %29 : vector<1x16xf32> to vector<32x16xf32>
    %31 = arith.mulf %26, %30 : vector<32x16xf32>
    %32 = vector.broadcast %5 : vector<32x1xf32> to vector<32x16xf32>
    %33 = arith.mulf %31, %32 : vector<32x16xf32>
    %34 = vector.broadcast %6 : vector<32x1xf32> to vector<32x16xf32>
    %35 = arith.addf %33, %34 : vector<32x16xf32>
    %c0_19 = arith.constant 0 : index
    %c0_20 = arith.constant 0 : index
    %36 = vector.load %arg4[%c0_19, %c0_20] : memref<128x32xf32, #tpu.memory_space<vmem>>, vector<32x32xf32>
    %c32_21 = arith.constant 32 : index
    %c0_22 = arith.constant 0 : index
    %37 = vector.load %arg4[%c32_21, %c0_22] : memref<128x32xf32, #tpu.memory_space<vmem>>, vector<64x32xf32>
    %c96_23 = arith.constant 96 : index
    %c0_24 = arith.constant 0 : index
    %38 = vector.load %arg4[%c96_23, %c0_24] : memref<128x32xf32, #tpu.memory_space<vmem>>, vector<32x32xf32>
    %cst_25 = arith.constant dense<0.000000e+00> : vector<32x256xf32>
    %39 = tpu.matmul %36, %1, %cst_25 {dimension_numbers = #tpu.dot_dimension_numbers<[1], [0], [0], [1], [0, 0, 1, 1], [], []>} : vector<32x32xf32>, vector<32x256xf32>, vector<32x256xf32> -> vector<32x256xf32>
    %40 = vector.broadcast %7 : vector<32x1xf32> to vector<32x256xf32>
    %41 = arith.addf %39, %40 : vector<32x256xf32>
    %cst_26 = arith.constant dense<0.000000e+00> : vector<64x16xf32>
    %42 = tpu.matmul %37, %35, %cst_26 {dimension_numbers = #tpu.dot_dimension_numbers<[1], [0], [0], [1], [0, 0, 1, 1], [], []>} : vector<64x32xf32>, vector<32x16xf32>, vector<64x16xf32> -> vector<64x16xf32>
    %43 = vector.broadcast %8 : vector<64x1xf32> to vector<64x16xf32>
    %44 = arith.addf %42, %43 : vector<64x16xf32>
    %45 = vector.extract_strided_slice %44 {offsets = [0, 0], sizes = [32, 16], strides = [1, 1]} : vector<64x16xf32> to vector<32x16xf32>
    %46 = vector.extract_strided_slice %44 {offsets = [32, 0], sizes = [32, 16], strides = [1, 1]} : vector<64x16xf32> to vector<32x16xf32>
    %47 = vector.shape_cast %41 : vector<32x256xf32> to vector<4x8x256xf32>
    %48 = vector.shape_cast %45 : vector<32x16xf32> to vector<4x8x16xf32>
    %49 = vector.shape_cast %46 : vector<32x16xf32> to vector<4x8x16xf32>
    "tpu.trace_start"() <{level = 10 : i32, message = "hdm,hdn->hmn"}> : () -> ()
    %cst_27 = arith.constant dense<0.000000e+00> : vector<4x16x256xf32>
    %50 = tpu.matmul %48, %47, %cst_27 {dimension_numbers = #tpu.dot_dimension_numbers<[1], [1], [2], [2], [0, 0, 0, 2, 1, 2], [0], [0]>} : vector<4x8x16xf32>, vector<4x8x256xf32>, vector<4x16x256xf32> -> vector<4x16x256xf32>
    "tpu.trace_stop"() : () -> ()
    %cst_28 = arith.constant dense<0xFF800000> : vector<4x256xf32>
    %51 = vector.multi_reduction <maximumf>, %50, %cst_28 [1] : vector<4x16x256xf32> to vector<4x256xf32>
    %52 = vector.shape_cast %51 : vector<4x256xf32> to vector<4x1x256xf32>
    %53 = vector.broadcast %52 : vector<4x1x256xf32> to vector<4x16x256xf32>
    %54 = arith.subf %50, %53 : vector<4x16x256xf32>
    %55 = math.exp %54 : vector<4x16x256xf32>
    %cst_29 = arith.constant dense<0.000000e+00> : vector<4x256xf32>
    %56 = vector.multi_reduction <add>, %55, %cst_29 [1] : vector<4x16x256xf32> to vector<4x256xf32>
    %57 = vector.shape_cast %56 : vector<4x256xf32> to vector<4x1x256xf32>
    %cst_30 = arith.constant 1.000000e+00 : f32
    %58 = vector.broadcast %cst_30 : f32 to vector<4x1x256xf32>
    %59 = arith.divf %58, %57 : vector<4x1x256xf32>
    %60 = vector.broadcast %59 : vector<4x1x256xf32> to vector<4x16x256xf32>
    %61 = arith.mulf %55, %60 : vector<4x16x256xf32>
    "tpu.trace_start"() <{level = 10 : i32, message = "hdm,hmn->hdn"}> : () -> ()
    %cst_31 = arith.constant dense<0.000000e+00> : vector<4x8x256xf32>
    %62 = tpu.matmul %49, %61, %cst_31 {dimension_numbers = #tpu.dot_dimension_numbers<[2], [1], [1], [2], [0, 0, 0, 1, 1, 2], [0], [0]>} : vector<4x8x16xf32>, vector<4x16x256xf32>, vector<4x8x256xf32> -> vector<4x8x256xf32>
    "tpu.trace_stop"() : () -> ()
    %63 = vector.shape_cast %62 : vector<4x8x256xf32> to vector<32x256xf32>
    %cst_32 = arith.constant dense<0.000000e+00> : vector<32x256xf32>
    %64 = tpu.matmul %38, %63, %cst_32 {dimension_numbers = #tpu.dot_dimension_numbers<[1], [0], [0], [1], [0, 0, 1, 1], [], []>} : vector<32x32xf32>, vector<32x256xf32>, vector<32x256xf32> -> vector<32x256xf32>
    %65 = vector.broadcast %9 : vector<32x1xf32> to vector<32x256xf32>
    %66 = arith.addf %64, %65 : vector<32x256xf32>
    %c0_33 = arith.constant 0 : index
    %c0_34 = arith.constant 0 : index
    %c0_35 = arith.constant 0 : index
    %67 = vector.load %arg6[%c0_33, %c0_34, %c0_35] : memref<1x32x256xf32, #tpu.memory_space<vmem>>, vector<1x32x256xf32>
    %68 = vector.shape_cast %67 : vector<1x32x256xf32> to vector<32x256xf32>
    %69 = vector.shape_cast %66 : vector<32x256xf32> to vector<1x32x256xf32>
    tpu.vector_store %arg6[%c0_33, %c0_34, %c0_35], %69 {strides = array<i32>} : memref<1x32x256xf32, #tpu.memory_space<vmem>>, vector<1x32x256xf32>,
    return
  }
  func.func @transform_0(%arg0: i32) -> (i32, i32, i32) {
    %c0_i32 = arith.constant 0 : i32
    %c0_i32_0 = arith.constant 0 : i32
    %c0_i32_1 = arith.constant 0 : i32
    return %arg0, %c0_i32, %c0_i32_0 : i32, i32, i32
  }
  func.func @transform_1(%arg0: i32) -> (i32, i32, i32) {
    %c0_i32 = arith.constant 0 : i32
    %c0_i32_0 = arith.constant 0 : i32
    %c0_i32_1 = arith.constant 0 : i32
    return %arg0, %c0_i32, %c0_i32_0 : i32, i32, i32
  }
  func.func @transform_2(%arg0: i32) -> (i32, i32) {
    %c0_i32 = arith.constant 0 : i32
    %c0_i32_0 = arith.constant 0 : i32
    %c0_i32_1 = arith.constant 0 : i32
    return %c0_i32, %c0_i32_0 : i32, i32
  }
  func.func @transform_3(%arg0: i32) -> (i32, i32) {
    %c0_i32 = arith.constant 0 : i32
    %c0_i32_0 = arith.constant 0 : i32
    %c0_i32_1 = arith.constant 0 : i32
    return %c0_i32, %c0_i32_0 : i32, i32
  }
  func.func @transform_4(%arg0: i32) -> (i32, i32) {
    %c0_i32 = arith.constant 0 : i32
    %c0_i32_0 = arith.constant 0 : i32
    %c0_i32_1 = arith.constant 0 : i32
    return %c0_i32, %c0_i32_0 : i32, i32
  }
  func.func @transform_5(%arg0: i32) -> (i32, i32, i32) {
    %c0_i32 = arith.constant 0 : i32
    %c0_i32_0 = arith.constant 0 : i32
    %c0_i32_1 = arith.constant 0 : i32
    return %arg0, %c0_i32, %c0_i32_0 : i32, i32, i32
  }
}

</mosaic_0001>

<llo_original>
// kernel: efficient_self_attention.1
$region0: #{efficient_self_attention.1}
  #allocation0 [shape = 'u32[]', space=smem, size = 0x4, offset = 0x4, fixed_abs, tag = 'smem constant byte address 0x4 - core index']
  #allocation1 [shape = 'u32[72,128]{1,0:T(1,128)}', space=vmem, size = 0x9000, scoped, tag = 'internal scratch']
  %s0 = inlined_call_operand.vmem [shape: f32[2,32,256], index: 0, kind: input, shape index: {}]
  %s1 = inlined_call_operand.vmem [shape: f32[2,16,512], index: 1, kind: input, shape index: {}]
  %s2 = inlined_call_operand.vmem [shape: f32[32,512], index: 2, kind: input, shape index: {}]
  %s3 = inlined_call_operand.vmem [shape: f32[128,32], index: 3, kind: input, shape index: {}]
  %s4 = inlined_call_operand.vmem [shape: f32[224,1], index: 4, kind: input, shape index: {}]
  %s5 = inlined_call_operand.vmem [shape: f32[2,32,256], index: 5, kind: output, shape index: {}]
  %s6 = sld [smem:[#allocation0]]
  $region53: #{efficient_self_attention.1} parent=0
    _
  %s8 = ssub.s32 1, %s6
  %s9 = scalar_select 0, %s8, %s6
  loop: start=0, step=1, limit=4
  $region2: #{efficient_self_attention.1} parent=0 // loop_pre_header
    _
  $region3: #{efficient_self_attention.1} parent=0 // loop_header
    %s11 = sphi 0, %s15
    %p12 = scmp.ge.s32.totalorder %s11, 4
    %s21 = sphi 0, %s23
    %s24 = sphi 0, %s21
    %s25 = sphi 0, %s24
    %s41 = sphi 0, %s25
    %s47 = sphi 0, %s49
    %s50 = sphi 0, %s47
    %s51 = sphi 0, %s50
    %s67 = sphi 0, %s51
    %s71 = sphi 0, %s71
    %s73 = sphi 0, %s71
    %s74 = sphi 0, %s73
    %s88 = sphi 0, %s74
    %s92 = sphi 0, %s92
    %s94 = sphi 0, %s92
    %s95 = sphi 0, %s94
    %s109 = sphi 0, %s95
    %s113 = sphi 0, %s113
    %s115 = sphi 0, %s113
    %s116 = sphi 0, %s115
    %s130 = sphi 0, %s116
    %s136 = sphi 0, %s138
    %s139 = sphi 0, %s136
    %s140 = sphi 0, %s139
    %s156 = sphi 0, %s140
  $region4: #{efficient_self_attention.1} parent=0 // loop_header_branch
    %14 = sbr.rel (%p12) target = $region8
  $region5: #{efficient_self_attention.1} parent=0 // loop_body
    %s16 = ssub.s32 %s11, 1
    %s17 = ssub.s32 %s11, 2
    %s18 = sadd.s32 %s11, 1
    %s19 = ssub.s32 %s11, %s18
    %p20 = scmp.eq.s32.totalorder %s19, 0
    %s22 = sadd.s32 %s21, 1
    %s23 = scalar_select %p20, %s21, %s22
    %p26 = pneg %p20
    %p27 = scmp.eq.s32.totalorder %s11, 1
    %p28 = por %p26, %p27
    %p29 = scmp.ne.s32.totalorder %s21, %s24
    %p30 = scmp.eq.s32.totalorder %s11, 0
    %p31 = por %p29, %p30
    %p32 = scmp.ne.s32.totalorder %s21, %s24
    %p33 = scmp.eq.s32.totalorder %s16, 1
    %p34 = por %p32, %p33
    %p35 = scmp.ne.s32.totalorder %s24, %s25
    %p36 = scmp.eq.s32.totalorder %s16, 0
    %p37 = por %p35, %p36
    %p38 = scmp.ne.s32.totalorder %s24, %s25
    %p39 = scmp.eq.s32.totalorder %s17, 1
    %p40 = por %p38, %p39
    %p42 = scmp.ne.s32.totalorder %s25, %s41
    %p43 = scmp.eq.s32.totalorder %s17, 0
    %p44 = por %p42, %p43
    %s45 = ssub.s32 %s11, %s18
    %p46 = scmp.eq.s32.totalorder %s45, 0
    %s48 = sadd.s32 %s47, 1
    %s49 = scalar_select %p46, %s47, %s48
    %p52 = pneg %p46
    %p53 = scmp.eq.s32.totalorder %s11, 1
    %p54 = por %p52, %p53
    %p55 = scmp.ne.s32.totalorder %s47, %s50
    %p56 = scmp.eq.s32.totalorder %s11, 0
    %p57 = por %p55, %p56
    %p58 = scmp.ne.s32.totalorder %s47, %s50
    %p59 = scmp.eq.s32.totalorder %s16, 1
    %p60 = por %p58, %p59
    %p61 = scmp.ne.s32.totalorder %s50, %s51
    %p62 = scmp.eq.s32.totalorder %s16, 0
    %p63 = por %p61, %p62
    %p64 = scmp.ne.s32.totalorder %s50, %s51
    %p65 = scmp.eq.s32.totalorder %s17, 1
    %p66 = por %p64, %p65
    %p68 = scmp.ne.s32.totalorder %s51, %s67
    %p69 = scmp.eq.s32.totalorder %s17, 0
    %p70 = por %p68, %p69
    %s72 = sadd.s32 %s71, 1
    %p75 = scmp.eq.s32.totalorder %s11, 1
    %p76 = scmp.ne.s32.totalorder %s71, %s73
    %p77 = scmp.eq.s32.totalorder %s11, 0
    %p78 = por %p76, %p77
    %p79 = scmp.ne.s32.totalorder %s71, %s73
    %p80 = scmp.eq.s32.totalorder %s16, 1
    %p81 = por %p79, %p80
    %p82 = scmp.ne.s32.totalorder %s73, %s74
    %p83 = scmp.eq.s32.totalorder %s16, 0
    %p84 = por %p82, %p83
    %p85 = scmp.ne.s32.totalorder %s73, %s74
    %p86 = scmp.eq.s32.totalorder %s17, 1
    %p87 = por %p85, %p86
    %p89 = scmp.ne.s32.totalorder %s74, %s88
    %p90 = scmp.eq.s32.totalorder %s17, 0
    %p91 = por %p89, %p90
    %s93 = sadd.s32 %s92, 1
    %p96 = scmp.eq.s32.totalorder %s11, 1
    %p97 = scmp.ne.s32.totalorder %s92, %s94
    %p98 = scmp.eq.s32.totalorder %s11, 0
    %p99 = por %p97, %p98
    %p100 = scmp.ne.s32.totalorder %s92, %s94
    %p101 = scmp.eq.s32.totalorder %s16, 1
    %p102 = por %p100, %p101
    %p103 = scmp.ne.s32.totalorder %s94, %s95
    %p104 = scmp.eq.s32.totalorder %s16, 0
    %p105 = por %p103, %p104
    %p106 = scmp.ne.s32.totalorder %s94, %s95
    %p107 = scmp.eq.s32.totalorder %s17, 1
    %p108 = por %p106, %p107
    %p110 = scmp.ne.s32.totalorder %s95, %s109
    %p111 = scmp.eq.s32.totalorder %s17, 0
    %p112 = por %p110, %p111
    %s114 = sadd.s32 %s113, 1
    %p117 = scmp.eq.s32.totalorder %s11, 1
    %p118 = scmp.ne.s32.totalorder %s113, %s115
    %p119 = scmp.eq.s32.totalorder %s11, 0
    %p120 = por %p118, %p119
    %p121 = scmp.ne.s32.totalorder %s113, %s115
    %p122 = scmp.eq.s32.totalorder %s16, 1
    %p123 = por %p121, %p122
    %p124 = scmp.ne.s32.totalorder %s115, %s116
    %p125 = scmp.eq.s32.totalorder %s16, 0
    %p126 = por %p124, %p125
    %p127 = scmp.ne.s32.totalorder %s115, %s116
    %p128 = scmp.eq.s32.totalorder %s17, 1
    %p129 = por %p127, %p128
    %p131 = scmp.ne.s32.totalorder %s116, %s130
    %p132 = scmp.eq.s32.totalorder %s17, 0
    %p133 = por %p131, %p132
    %s134 = ssub.s32 %s11, %s18
    %p135 = scmp.eq.s32.totalorder %s134, 0
    %s137 = sadd.s32 %s136, 1
    %s138 = scalar_select %p135, %s136, %s137
    %p141 = pneg %p135
    %p142 = scmp.eq.s32.totalorder %s11, 1
    %p143 = por %p141, %p142
    %p144 = scmp.ne.s32.totalorder %s136, %s139
    %p145 = scmp.eq.s32.totalorder %s11, 0
    %p146 = por %p144, %p145
    %p147 = scmp.ne.s32.totalorder %s136, %s139
    %p148 = scmp.eq.s32.totalorder %s16, 1
    %p149 = por %p147, %p148
    %p150 = scmp.ne.s32.totalorder %s139, %s140
    %p151 = scmp.eq.s32.totalorder %s16, 0
    %p152 = por %p150, %p151
    %p153 = scmp.ne.s32.totalorder %s139, %s140
    %p154 = scmp.eq.s32.totalorder %s17, 1
    %p155 = por %p153, %p154
    %p157 = scmp.ne.s32.totalorder %s140, %s156
    %p158 = scmp.eq.s32.totalorder %s17, 0
    %p159 = por %p157, %p158
    %p160 = scmp.le.s32.totalorder 1, %s11
    %p161 = scmp.lt.s32.totalorder %s11, 3
    %p162 = pnand %p160, %p161
    %p163 = pneg %p162
    // Predicated region
    $region9: #{efficient_self_attention.1} parent=5 // pred_check
      _
    $region10: #{efficient_self_attention.1} parent=5 // pred_check_branch
      %165 = sbr.rel (%p162) target = $region12
    $region11: #{efficient_self_attention.1} parent=5 // pred_region
      %s166 = ssub.s32 %s11, 1
      // Predicated region
      $region13: #{efficient_self_attention.1} parent=11 // pred_check
        %p167 = pneg %p84
      $region14: #{efficient_self_attention.1} parent=11 // pred_check_branch
        %169 = sbr.rel (%p167) target = $region16
      $region15: #{efficient_self_attention.1} parent=11 // pred_region
        _
      $region16: #{efficient_self_attention.1} parent=11 // pred_fallthru
        _
      // Predicated region
      $region17: #{efficient_self_attention.1} parent=11 // pred_check
        %p170 = pneg %p105
      $region18: #{efficient_self_attention.1} parent=11 // pred_check_branch
        %172 = sbr.rel (%p170) target = $region20
      $region19: #{efficient_self_attention.1} parent=11 // pred_region
        _
      $region20: #{efficient_self_attention.1} parent=11 // pred_fallthru
        _
      // Predicated region
      $region21: #{efficient_self_attention.1} parent=11 // pred_check
        %p173 = pneg %p126
      $region22: #{efficient_self_attention.1} parent=11 // pred_check_branch
        %175 = sbr.rel (%p173) target = $region24
      $region23: #{efficient_self_attention.1} parent=11 // pred_region
        _
      $region24: #{efficient_self_attention.1} parent=11 // pred_fallthru
        _
    $region12: #{efficient_self_attention.1} parent=5 // pred_fallthru
      _
    %p176 = scmp.lt.s32.totalorder %s11, 2
    // Predicated region
    $region25: #{efficient_self_attention.1} parent=5 // pred_check
      %p177 = pneg %p176
    $region26: #{efficient_self_attention.1} parent=5 // pred_check_branch
      %179 = sbr.rel (%p177) target = $region28
    $region27: #{efficient_self_attention.1} parent=5 // pred_region
      // Predicated region
      $region29: #{efficient_self_attention.1} parent=27 // pred_check
        %p180 = pneg %p31
      $region30: #{efficient_self_attention.1} parent=27 // pred_check_branch
        %182 = sbr.rel (%p180) target = $region32
      $region31: #{efficient_self_attention.1} parent=27 // pred_region
        %p183 = scmp.lt.s32.totalorder %s11, 1
        %s184 = scalar_select %p183, %s11, 1
        %s185 = smul.addr %s184, 8
        %s186 = smul.addr %s185, 8
        %s187 = scalar_lea.vmem %s0, %s186
      $region32: #{efficient_self_attention.1} parent=27 // pred_fallthru
        _
      // Predicated region
      $region33: #{efficient_self_attention.1} parent=27 // pred_check
        %p188 = pneg %p57
      $region34: #{efficient_self_attention.1} parent=27 // pred_check_branch
        %190 = sbr.rel (%p188) target = $region36
      $region35: #{efficient_self_attention.1} parent=27 // pred_region
        %p191 = scmp.lt.s32.totalorder %s11, 1
        %s192 = scalar_select %p191, %s11, 1
        %s193 = smul.addr %s192, 8
        %s194 = smul.addr %s193, 8
        %s195 = scalar_lea.vmem %s1, %s194
      $region36: #{efficient_self_attention.1} parent=27 // pred_fallthru
        _
    $region28: #{efficient_self_attention.1} parent=5 // pred_fallthru
      _
    %p196 = scmp.le.s32.totalorder 1, %s11
    %p197 = scmp.lt.s32.totalorder %s11, 3
    %p198 = pnand %p196, %p197
    %p199 = pneg %p198
    // Predicated region
    $region37: #{efficient_self_attention.1} parent=5 // pred_check
      _
    $region38: #{efficient_self_attention.1} parent=5 // pred_check_branch
      %201 = sbr.rel (%p198) target = $region40
    $region39: #{efficient_self_attention.1} parent=5 // pred_region
      %s202 = ssub.s32 %s11, 1
      %p203 = scmp.lt.s32.totalorder %s16, 1
      %s204 = scalar_select %p203, %s16, 1
      %s205 = smul.addr %s204, 8
      %s206 = smul.addr %s205, 8
      %s207 = scalar_lea.vmem %s0, %s206
      %p208 = pneg %p37
      %p209 = pneg %p34
      %p210 = scmp.lt.s32.totalorder %s16, 1
      %s211 = scalar_select %p210, %s16, 1
      %s212 = smul.addr %s211, 8
      %s213 = smul.addr %s212, 8
      %s214 = scalar_lea.vmem %s1, %s213
      %p215 = pneg %p63
      %p216 = pneg %p60
      %p217 = pneg %p84
      %p218 = pneg %p81
      %p219 = pneg %p105
      %p220 = pneg %p102
      %p221 = pneg %p126
      %p222 = pneg %p123
      %p223 = pneg %p152
      %p224 = pneg %p149
      %p225 = scmp.lt.s32.totalorder %s16, 1
      %s226 = scalar_select %p225, %s16, 1
      %s227 = smul.addr %s226, 8
      %s228 = smul.addr %s227, 8
      %s229 = scalar_lea.vmem %s5, %s228
      %p230 = scmp.lt.s32.totalorder %s16, 1
      %s231 = scalar_select %p230, %s16, 1
      %s232 = smul.addr %s231, 8
      %s233 = smul.addr %s232, 8
      %s234 = scalar_lea.vmem %s0, %s233
      %p235 = scmp.lt.s32.totalorder %s16, 1
      %s236 = scalar_select %p235, %s16, 1
      %s237 = smul.addr %s236, 8
      %s238 = smul.addr %s237, 8
      %s239 = scalar_lea.vmem %s1, %s238
      %p240 = scmp.lt.s32.totalorder %s16, 1
      %s241 = scalar_select %p240, %s16, 1
      %s242 = smul.addr %s241, 8
      %s243 = smul.addr %s242, 8
      %s244 = scalar_lea.vmem %s5, %s243
      %v245 = vld [vmem:[%s234] sm:$0xff]
      %v246 = vld [vmem:[%s234 + $0x8] sm:$0xff]
      %v247 = vld [vmem:[%s234 + $0x10] sm:$0xff]
      %v248 = vld [vmem:[%s234 + $0x18] sm:$0xff]
      %v249 = vld [vmem:[%s234 + $0x20] sm:$0xff]
      %v250 = vld [vmem:[%s234 + $0x28] sm:$0xff]
      %v251 = vld [vmem:[%s234 + $0x30] sm:$0xff]
      %v252 = vld [vmem:[%s234 + $0x38] sm:$0xff]
      %v253 = vld [vmem:[%s239] sm:$0xff]
      %v254 = vld [vmem:[%s239 + $0x8] sm:$0xff]
      %v255 = vld [vmem:[%s239 + $0x10] sm:$0xff]
      %v256 = vld [vmem:[%s239 + $0x18] sm:$0xff]
      %v257 = vld [vmem:[%s239 + $0x20] sm:$0xff]
      %v258 = vld [vmem:[%s239 + $0x28] sm:$0xff]
      %v259 = vld [vmem:[%s239 + $0x30] sm:$0xff]
      %v260 = vld [vmem:[%s239 + $0x38] sm:$0xff]
      %v261 = vld [vmem:[%s4] sm:$0xff]
      %v262 = vld [vmem:[%s4 + $0x8] sm:$0xff]
      %v263 = vld [vmem:[%s4 + $0x10] sm:$0xff]
      %v264 = vld [vmem:[%s4 + $0x18] sm:$0xff]
      %v265 = vld [vmem:[%s4 + $0x20] sm:$0xff]
      %v266 = vld [vmem:[%s4 + $0x28] sm:$0xff]
      %v267 = vld [vmem:[%s4 + $0x30] sm:$0xff]
      %v268 = vld [vmem:[%s4 + $0x38] sm:$0xff]
      %v269 = vld [vmem:[%s4 + $0x40] sm:$0xff]
      %v270 = vld [vmem:[%s4 + $0x48] sm:$0xff]
      %v271 = vld [vmem:[%s4 + $0x50] sm:$0xff]
      %v272 = vld [vmem:[%s4 + $0x58] sm:$0xff]
      %v273 = vld [vmem:[%s4 + $0x60] sm:$0xff]
      %v274 = vld [vmem:[%s4 + $0x68] sm:$0xff]
      %v275 = vld [vmem:[%s4 + $0x70] sm:$0xff]
      %v276 = vld [vmem:[%s4 + $0x78] sm:$0xff]
      %v277 = vld [vmem:[%s4 + $0x80] sm:$0xff]
      %v278 = vld [vmem:[%s4 + $0x88] sm:$0xff]
      %v279 = vld [vmem:[%s4 + $0x90] sm:$0xff]
      %v280 = vld [vmem:[%s4 + $0x98] sm:$0xff]
      %v281 = vld [vmem:[%s4 + $0xa0] sm:$0xff]
      %v282 = vld [vmem:[%s4 + $0xa8] sm:$0xff]
      %v283 = vld [vmem:[%s4 + $0xb0] sm:$0xff]
      %v284 = vld [vmem:[%s4 + $0xb8] sm:$0xff]
      %v285 = vld [vmem:[%s4 + $0xc0] sm:$0xff]
      %v286 = vld [vmem:[%s4 + $0xc8] sm:$0xff]
      %v287 = vld [vmem:[%s4 + $0xd0] sm:$0xff]
      %v288 = vld [vmem:[%s4 + $0xd8] sm:$0xff]
      %v289 = vld [vmem:[%s2] sm:$0xff]
      %v290 = vld [vmem:[%s2 + $0x8] sm:$0xff]
      %v291 = vld [vmem:[%s2 + $0x10] sm:$0xff]
      %v292 = vld [vmem:[%s2 + $0x18] sm:$0xff]
      %v293 = vld [vmem:[%s2 + $0x20] sm:$0xff]
      %v294 = vld [vmem:[%s2 + $0x28] sm:$0xff]
      %v295 = vld [vmem:[%s2 + $0x30] sm:$0xff]
      %v296 = vld [vmem:[%s2 + $0x38] sm:$0xff]
      %v297 = vld [vmem:[%s2 + $0x40] sm:$0xff]
      %v298 = vld [vmem:[%s2 + $0x48] sm:$0xff]
      %v299 = vld [vmem:[%s2 + $0x50] sm:$0xff]
      %v300 = vld [vmem:[%s2 + $0x58] sm:$0xff]
      %v301 = vld [vmem:[%s2 + $0x60] sm:$0xff]
      %v302 = vld [vmem:[%s2 + $0x68] sm:$0xff]
      %v303 = vld [vmem:[%s2 + $0x70] sm:$0xff]
      %v304 = vld [vmem:[%s2 + $0x78] sm:$0xff]
      %306 = vset.pattern.permute.xlu0 0
      %307 = vperm.xlu0 %306, %v261
      %v308 = vpop.permute.xlu0 %307
      %311 = vset.pattern.permute.xlu0 0
      %312 = vperm.xlu0 %311, %v262
      %v313 = vpop.permute.xlu0 %312
      %316 = vset.pattern.permute.xlu0 0
      %317 = vperm.xlu0 %316, %v263
      %v318 = vpop.permute.xlu0 %317
      %321 = vset.pattern.permute.xlu0 0
      %322 = vperm.xlu0 %321, %v264
      %v323 = vpop.permute.xlu0 %322
      %325 = vmatpush.xpose.msra.mxu0 0.0
      %326 = vmatpush.xpose.msra.mxu0 0.0
      %327 = vmatpush.xpose.msra.mxu0 0.0
      %328 = vmatpush.xpose.msra.mxu0 0.0
      %329 = vmatpush.xpose.msra.mxu0 0.0
      %330 = vmatpush.xpose.msra.mxu0 0.0
      %331 = vmatpush.xpose.msra.mxu0 0.0
      %332 = vmatpush.xpose.msra.mxu0 0.0
      %333 = vmatpush.xpose.msra.mxu0 0.0
      %334 = vmatpush.xpose.msra.mxu0 0.0
      %335 = vmatpush.xpose.msra.mxu0 0.0
      %336 = vmatpush.xpose.msra.mxu0 0.0
      %337 = vmatpush.xpose.msra.mxu0 0.0
      %338 = vmatpush.xpose.msra.mxu0 0.0
      %339 = vmatpush.xpose.msra.mxu0 %v257
      %340 = vmatpush.xpose.msra.mxu0 %v253
      %341 = vmatmul.f32.gmra.mxu0 %v289
      %v342 = vpop.f32.mrf.mxu0
      %v343 = vadd.f32 %v308, %v342
      %344 = vmatmul.f32.gmra.mxu0 %v293
      %v345 = vpop.f32.mrf.mxu0
      %v346 = vadd.f32 %v313, %v345
      %347 = vmatmul.f32.gmra.mxu0 %v297
      %v348 = vpop.f32.mrf.mxu0
      %v349 = vadd.f32 %v318, %v348
      %350 = vmatmul.f32.gmra.mxu0 %v301
      %v351 = vpop.f32.mrf.mxu0
      %v352 = vadd.f32 %v323, %v351
      %353 = vdwg.mxu0
      %354 = vmatpush.xpose.msra.mxu0 0.0
      %355 = vmatpush.xpose.msra.mxu0 0.0
      %356 = vmatpush.xpose.msra.mxu0 0.0
      %357 = vmatpush.xpose.msra.mxu0 0.0
      %358 = vmatpush.xpose.msra.mxu0 0.0
      %359 = vmatpush.xpose.msra.mxu0 0.0
      %360 = vmatpush.xpose.msra.mxu0 0.0
      %361 = vmatpush.xpose.msra.mxu0 0.0
      %362 = vmatpush.xpose.msra.mxu0 0.0
      %363 = vmatpush.xpose.msra.mxu0 0.0
      %364 = vmatpush.xpose.msra.mxu0 0.0
      %365 = vmatpush.xpose.msra.mxu0 0.0
      %366 = vmatpush.xpose.msra.mxu0 0.0
      %367 = vmatpush.xpose.msra.mxu0 0.0
      %368 = vmatpush.xpose.msra.mxu0 %v258
      %369 = vmatpush.xpose.msra.mxu0 %v254
      %370 = vmatmul.f32.gmra.mxu0 %v290
      %v371 = vpop.f32.mrf.mxu0
      %v372 = vadd.f32 %v343, %v371
      %373 = vmatmul.f32.gmra.mxu0 %v294
      %v374 = vpop.f32.mrf.mxu0
      %v375 = vadd.f32 %v346, %v374
      %376 = vmatmul.f32.gmra.mxu0 %v298
      %v377 = vpop.f32.mrf.mxu0
      %v378 = vadd.f32 %v349, %v377
      %379 = vmatmul.f32.gmra.mxu0 %v302
      %v380 = vpop.f32.mrf.mxu0
      %v381 = vadd.f32 %v352, %v380
      %382 = vdwg.mxu0
      %383 = vmatpush.xpose.msra.mxu0 0.0
      %384 = vmatpush.xpose.msra.mxu0 0.0
      %385 = vmatpush.xpose.msra.mxu0 0.0
      %386 = vmatpush.xpose.msra.mxu0 0.0
      %387 = vmatpush.xpose.msra.mxu0 0.0
      %388 = vmatpush.xpose.msra.mxu0 0.0
      %389 = vmatpush.xpose.msra.mxu0 0.0
      %390 = vmatpush.xpose.msra.mxu0 0.0
      %391 = vmatpush.xpose.msra.mxu0 0.0
      %392 = vmatpush.xpose.msra.mxu0 0.0
      %393 = vmatpush.xpose.msra.mxu0 0.0
      %394 = vmatpush.xpose.msra.mxu0 0.0
      %395 = vmatpush.xpose.msra.mxu0 0.0
      %396 = vmatpush.xpose.msra.mxu0 0.0
      %397 = vmatpush.xpose.msra.mxu0 %v259
      %398 = vmatpush.xpose.msra.mxu0 %v255
      %399 = vmatmul.f32.gmra.mxu0 %v291
      %v400 = vpop.f32.mrf.mxu0
      %v401 = vadd.f32 %v372, %v400
      %402 = vmatmul.f32.gmra.mxu0 %v295
      %v403 = vpop.f32.mrf.mxu0
      %v404 = vadd.f32 %v375, %v403
      %405 = vmatmul.f32.gmra.mxu0 %v299
      %v406 = vpop.f32.mrf.mxu0
      %v407 = vadd.f32 %v378, %v406
      %408 = vmatmul.f32.gmra.mxu0 %v303
      %v409 = vpop.f32.mrf.mxu0
      %v410 = vadd.f32 %v381, %v409
      %411 = vdwg.mxu0
      %412 = vmatpush.xpose.msra.mxu0 0.0
      %413 = vmatpush.xpose.msra.mxu0 0.0
      %414 = vmatpush.xpose.msra.mxu0 0.0
      %415 = vmatpush.xpose.msra.mxu0 0.0
      %416 = vmatpush.xpose.msra.mxu0 0.0
      %417 = vmatpush.xpose.msra.mxu0 0.0
      %418 = vmatpush.xpose.msra.mxu0 0.0
      %419 = vmatpush.xpose.msra.mxu0 0.0
      %420 = vmatpush.xpose.msra.mxu0 0.0
      %421 = vmatpush.xpose.msra.mxu0 0.0
      %422 = vmatpush.xpose.msra.mxu0 0.0
      %423 = vmatpush.xpose.msra.mxu0 0.0
      %424 = vmatpush.xpose.msra.mxu0 0.0
      %425 = vmatpush.xpose.msra.mxu0 0.0
      %426 = vmatpush.xpose.msra.mxu0 %v260
      %427 = vmatpush.xpose.msra.mxu0 %v256
      %428 = vmatmul.f32.gmra.mxu0 %v292
      %v429 = vpop.f32.mrf.mxu0
      %v430 = vadd.f32 %v401, %v429
      %431 = vmatmul.f32.gmra.mxu0 %v296
      %v432 = vpop.f32.mrf.mxu0
      %v433 = vadd.f32 %v404, %v432
      %434 = vmatmul.f32.gmra.mxu0 %v300
      %v435 = vpop.f32.mrf.mxu0
      %v436 = vadd.f32 %v407, %v435
      %437 = vmatmul.f32.gmra.mxu0 %v304
      %v438 = vpop.f32.mrf.mxu0
      %v439 = vadd.f32 %v410, %v438
      %440 = vdwg.mxu0
      %vm441 = vcmask 130048
      %v442 = vsel %vm441, %v430, 0.0
      %v443 = vsel %vm441, %v433, 0.0
      %v444 = vadd.f32 %v442, %v443
      %v445 = vsel %vm441, %v436, 0.0
      %v446 = vadd.f32 %v444, %v445
      %v447 = vsel %vm441, %v439, 0.0
      %v448 = vadd.f32 %v446, %v447
      %v449 = vrot.slane %v448, 4
      %v450 = vadd.f32 %v448, %v449
      %v451 = vrot.slane %v450, 2
      %v452 = vadd.f32 %v450, %v451
      %v453 = vrot.slane %v452, 1
      %v454 = vadd.f32 %v452, %v453
      %v455 = vrcp.pop 32.0
      %v456 = vmul.f32 32.0, %v455
      %v457 = vsub.f32 1.0, %v456
      %v458 = vmul.f32 %v455, %v457
      %v459 = vadd.f32 %v455, %v458
      %vm460 = vweird.f32 %v455
      %v461 = vsel %vm460, %v455, %v459
      %v462 = vmul.f32 %v454, %v461
      %v463 = vsub.f32 %v430, %v462
      %v464 = vsub.f32 %v433, %v462
      %v465 = vsub.f32 %v436, %v462
      %v466 = vsub.f32 %v439, %v462
      %v467 = vmul.f32 %v463, %v463
      %v468 = vmul.f32 %v464, %v464
      %v469 = vmul.f32 %v465, %v465
      %v470 = vmul.f32 %v466, %v466
      %v471 = vsel %vm441, %v467, 0.0
      %v472 = vsel %vm441, %v468, 0.0
      %v473 = vadd.f32 %v471, %v472
      %v474 = vsel %vm441, %v469, 0.0
      %v475 = vadd.f32 %v473, %v474
      %v476 = vsel %vm441, %v470, 0.0
      %v477 = vadd.f32 %v475, %v476
      %v478 = vrot.slane %v477, 4
      %v479 = vadd.f32 %v477, %v478
      %v480 = vrot.slane %v479, 2
      %v481 = vadd.f32 %v479, %v480
      %v482 = vrot.slane %v481, 1
      %v483 = vadd.f32 %v481, %v482
      %v484 = vmul.f32 %v483, %v461
      %v485 = vadd.f32 %v484, 1e-05
      %v486 = vrsqrt.pop %v485
      %v487 = vmul.f32 %v486, %v485
      %v488 = vmul.f32 %v487, %v486
      %v489 = vmul.f32 0.5, %v488
      %v490 = vsub.f32 1.5, %v489
      %v491 = vmul.f32 %v486, %v490
      %vm492 = vweird.f32 %v485
      %vm493 = vweird.f32 %v486
      %vm494 = vmor %vm492, %vm493
      %v495 = vsel %vm494, %v486, %v491
      %v496 = vmul.f32 %v463, %v495
      %v497 = vmul.f32 %v464, %v495
      %v498 = vmul.f32 %v465, %v495
      %v499 = vmul.f32 %v466, %v495
      %501 = vset.pattern.permute.xlu0 0
      %502 = vperm.xlu0 %501, %v265
      %v503 = vpop.permute.xlu0 %502
      %506 = vset.pattern.permute.xlu0 0
      %507 = vperm.xlu0 %506, %v266
      %v508 = vpop.permute.xlu0 %507
      %511 = vset.pattern.permute.xlu0 0
      %512 = vperm.xlu0 %511, %v267
      %v513 = vpop.permute.xlu0 %512
      %516 = vset.pattern.permute.xlu0 0
      %517 = vperm.xlu0 %516, %v268
      %v518 = vpop.permute.xlu0 %517
      %v520 = vmul.f32 %v496, %v503
      %v521 = vmul.f32 %v497, %v508
      %v522 = vmul.f32 %v498, %v513
      %v523 = vmul.f32 %v499, %v518
      %525 = vset.pattern.permute.xlu0 0
      %526 = vperm.xlu0 %525, %v269
      %v527 = vpop.permute.xlu0 %526
      %530 = vset.pattern.permute.xlu0 0
      %531 = vperm.xlu0 %530, %v270
      %v532 = vpop.permute.xlu0 %531
      %535 = vset.pattern.permute.xlu0 0
      %536 = vperm.xlu0 %535, %v271
      %v537 = vpop.permute.xlu0 %536
      %540 = vset.pattern.permute.xlu0 0
      %541 = vperm.xlu0 %540, %v272
      %v542 = vpop.permute.xlu0 %541
      %v544 = vadd.f32 %v520, %v527
      %v545 = vadd.f32 %v521, %v532
      %v546 = vadd.f32 %v522, %v537
      %v547 = vadd.f32 %v523, %v542
      %v548 = vld [vmem:[%s3] sm:$0xff]
      %v549 = vld [vmem:[%s3 + $0x8] sm:$0xff]
      %v550 = vld [vmem:[%s3 + $0x10] sm:$0xff]
      %v551 = vld [vmem:[%s3 + $0x18] sm:$0xff]
      %v552 = vld [vmem:[%s3 + $0x20] sm:$0xff]
      %v553 = vld [vmem:[%s3 + $0x28] sm:$0xff]
      %v554 = vld [vmem:[%s3 + $0x30] sm:$0xff]
      %v555 = vld [vmem:[%s3 + $0x38] sm:$0xff]
      %v556 = vld [vmem:[%s3 + $0x40] sm:$0xff]
      %v557 = vld [vmem:[%s3 + $0x48] sm:$0xff]
      %v558 = vld [vmem:[%s3 + $0x50] sm:$0xff]
      %v559 = vld [vmem:[%s3 + $0x58] sm:$0xff]
      %v560 = vld [vmem:[%s3 + $0x60] sm:$0xff]
      %v561 = vld [vmem:[%s3 + $0x68] sm:$0xff]
      %v562 = vld [vmem:[%s3 + $0x70] sm:$0xff]
      %v563 = vld [vmem:[%s3 + $0x78] sm:$0xff]
      %565 = vset.pattern.permute.xlu0 0
      %566 = vperm.xlu0 %565, %v273
      %v567 = vpop.permute.xlu0 %566
      %570 = vset.pattern.permute.xlu0 0
      %571 = vperm.xlu0 %570, %v274
      %v572 = vpop.permute.xlu0 %571
      %575 = vset.pattern.permute.xlu0 0
      %576 = vperm.xlu0 %575, %v275
      %v577 = vpop.permute.xlu0 %576
      %580 = vset.pattern.permute.xlu0 0
      %581 = vperm.xlu0 %580, %v276
      %v582 = vpop.permute.xlu0 %581
      %vm584 = vcmask 261120
      %v586 = vsel %vm584, %v548, 0
      %v589 = vsel %vm584, %v549, 0
      %v592 = vsel %vm584, %v550, 0
      %v595 = vsel %vm584, %v551, 0
      %597 = vmatpush.msra.mxu0 0.0
      %598 = vmatpush.msra.mxu0 0.0
      %599 = vmatpush.msra.mxu0 0.0
      %600 = vmatpush.msra.mxu0 0.0
      %601 = vmatpush.msra.mxu0 0.0
      %602 = vmatpush.msra.mxu0 0.0
      %603 = vmatpush.msra.mxu0 0.0
      %604 = vmatpush.msra.mxu0 0.0
      %605 = vmatpush.msra.mxu0 0.0
      %606 = vmatpush.msra.mxu0 0.0
      %607 = vmatpush.msra.mxu0 0.0
      %608 = vmatpush.msra.mxu0 0.0
      %609 = vmatpush.msra.mxu0 %v251
      %610 = vmatpush.msra.mxu0 %v249
      %611 = vmatpush.msra.mxu0 %v247
      %612 = vmatpush.msra.mxu0 %v245
      %613 = vmatmul.f32.gmra.mxu0 %v586
      %v614 = vpop.f32.mrf.mxu0
      %v615 = vadd.f32 %v567, %v614
      %616 = vmatmul.f32.gmra.mxu0 %v589
      %v617 = vpop.f32.mrf.mxu0
      %v618 = vadd.f32 %v572, %v617
      %619 = vmatmul.f32.gmra.mxu0 %v592
      %v620 = vpop.f32.mrf.mxu0
      %v621 = vadd.f32 %v577, %v620
      %622 = vmatmul.f32.gmra.mxu0 %v595
      %v623 = vpop.f32.mrf.mxu0
      %v624 = vadd.f32 %v582, %v623
      %625 = vdwg.mxu0
      %626 = vmatpush.msra.mxu0 0.0
      %627 = vmatpush.msra.mxu0 0.0
      %628 = vmatpush.msra.mxu0 0.0
      %629 = vmatpush.msra.mxu0 0.0
      %630 = vmatpush.msra.mxu0 0.0
      %631 = vmatpush.msra.mxu0 0.0
      %632 = vmatpush.msra.mxu0 0.0
      %633 = vmatpush.msra.mxu0 0.0
      %634 = vmatpush.msra.mxu0 0.0
      %635 = vmatpush.msra.mxu0 0.0
      %636 = vmatpush.msra.mxu0 0.0
      %637 = vmatpush.msra.mxu0 0.0
      %638 = vmatpush.msra.mxu0 %v252
      %639 = vmatpush.msra.mxu0 %v250
      %640 = vmatpush.msra.mxu0 %v248
      %641 = vmatpush.msra.mxu0 %v246
      %642 = vmatmul.f32.gmra.mxu0 %v586
      %v643 = vpop.f32.mrf.mxu0
      %v644 = vadd.f32 %v567, %v643
      %645 = vmatmul.f32.gmra.mxu0 %v589
      %v646 = vpop.f32.mrf.mxu0
      %v647 = vadd.f32 %v572, %v646
      %648 = vmatmul.f32.gmra.mxu0 %v592
      %v649 = vpop.f32.mrf.mxu0
      %v650 = vadd.f32 %v577, %v649
      %651 = vmatmul.f32.gmra.mxu0 %v595
      %v652 = vpop.f32.mrf.mxu0
      %v653 = vadd.f32 %v582, %v652
      %654 = vdwg.mxu0
      %656 = vset.pattern.permute.xlu0 0
      %657 = vperm.xlu0 %656, %v277
      %v658 = vpop.permute.xlu0 %657
      %661 = vset.pattern.permute.xlu0 0
      %662 = vperm.xlu0 %661, %v278
      %v663 = vpop.permute.xlu0 %662
      %666 = vset.pattern.permute.xlu0 0
      %667 = vperm.xlu0 %666, %v279
      %v668 = vpop.permute.xlu0 %667
      %671 = vset.pattern.permute.xlu0 0
      %672 = vperm.xlu0 %671, %v280
      %v673 = vpop.permute.xlu0 %672
      %676 = vset.pattern.permute.xlu0 0
      %677 = vperm.xlu0 %676, %v281
      %v678 = vpop.permute.xlu0 %677
      %681 = vset.pattern.permute.xlu0 0
      %682 = vperm.xlu0 %681, %v282
      %v683 = vpop.permute.xlu0 %682
      %686 = vset.pattern.permute.xlu0 0
      %687 = vperm.xlu0 %686, %v283
      %v688 = vpop.permute.xlu0 %687
      %691 = vset.pattern.permute.xlu0 0
      %692 = vperm.xlu0 %691, %v284
      %v693 = vpop.permute.xlu0 %692
      %v696 = vsel %vm584, %v552, 0
      %v699 = vsel %vm584, %v553, 0
      %v702 = vsel %vm584, %v554, 0
      %v705 = vsel %vm584, %v555, 0
      %v708 = vsel %vm584, %v556, 0
      %v711 = vsel %vm584, %v557, 0
      %v714 = vsel %vm584, %v558, 0
      %v717 = vsel %vm584, %v559, 0
      %719 = vmatpush.msra.mxu0 0.0
      %720 = vmatpush.msra.mxu0 0.0
      %721 = vmatpush.msra.mxu0 0.0
      %722 = vmatpush.msra.mxu0 0.0
      %723 = vmatpush.msra.mxu0 0.0
      %724 = vmatpush.msra.mxu0 0.0
      %725 = vmatpush.msra.mxu0 0.0
      %726 = vmatpush.msra.mxu0 0.0
      %727 = vmatpush.msra.mxu0 0.0
      %728 = vmatpush.msra.mxu0 0.0
      %729 = vmatpush.msra.mxu0 0.0
      %730 = vmatpush.msra.mxu0 0.0
      %731 = vmatpush.msra.mxu0 %v547
      %732 = vmatpush.msra.mxu0 %v546
      %733 = vmatpush.msra.mxu0 %v545
      %734 = vmatpush.msra.mxu0 %v544
      %735 = vmatmul.f32.gmra.mxu0 %v696
      %v736 = vpop.f32.mrf.mxu0
      %v737 = vadd.f32 %v658, %v736
      %738 = vmatmul.f32.gmra.mxu0 %v699
      %v739 = vpop.f32.mrf.mxu0
      %v740 = vadd.f32 %v663, %v739
      %741 = vmatmul.f32.gmra.mxu0 %v702
      %v742 = vpop.f32.mrf.mxu0
      %v743 = vadd.f32 %v668, %v742
      %744 = vmatmul.f32.gmra.mxu0 %v705
      %v745 = vpop.f32.mrf.mxu0
      %v746 = vadd.f32 %v673, %v745
      %747 = vmatmul.f32.gmra.mxu0 %v708
      %v748 = vpop.f32.mrf.mxu0
      %v749 = vadd.f32 %v678, %v748
      %750 = vmatmul.f32.gmra.mxu0 %v711
      %v751 = vpop.f32.mrf.mxu0
      %v752 = vadd.f32 %v683, %v751
      %753 = vmatmul.f32.gmra.mxu0 %v714
      %v754 = vpop.f32.mrf.mxu0
      %v755 = vadd.f32 %v688, %v754
      %756 = vmatmul.f32.gmra.mxu0 %v717
      %v757 = vpop.f32.mrf.mxu0
      %v758 = vadd.f32 %v693, %v757
      %759 = vdwg.mxu0
      %760 = vxpose.xlu0.b32.start [1/16] %v737, 128
      %761 = vxpose.xlu0.b32.cont [2/16] 0.0, 128
      %762 = vxpose.xlu0.b32.cont [3/16] 0.0, 128
      %763 = vxpose.xlu0.b32.cont [4/16] 0.0, 128
      %764 = vxpose.xlu0.b32.cont [5/16] 0.0, 128
      %765 = vxpose.xlu0.b32.cont [6/16] 0.0, 128
      %766 = vxpose.xlu0.b32.cont [7/16] 0.0, 128
      %767 = vxpose.xlu0.b32.cont [8/16] 0.0, 128
      %768 = vxpose.xlu0.b32.cont [9/16] 0.0, 128
      %769 = vxpose.xlu0.b32.cont [10/16] 0.0, 128
      %770 = vxpose.xlu0.b32.cont [11/16] 0.0, 128
      %771 = vxpose.xlu0.b32.cont [12/16] 0.0, 128
      %772 = vxpose.xlu0.b32.cont [13/16] 0.0, 128
      %773 = vxpose.xlu0.b32.cont [14/16] 0.0, 128
      %774 = vxpose.xlu0.b32.cont [15/16] 0.0, 128
      %775 = vxpose.xlu0.b32.end [16/16] 0.0, 128
      %v776 = vpop.trf.xlu0
      %v777 = vpop.trf.xlu0
      %v778 = vpop.trf.xlu0
      %v779 = vpop.trf.xlu0
      %v780 = vpop.trf.xlu0
      %v781 = vpop.trf.xlu0
      %v782 = vpop.trf.xlu0
      %v783 = vpop.trf.xlu0
      %v784 = vpop.trf.xlu0
      %v785 = vpop.trf.xlu0
      %v786 = vpop.trf.xlu0
      %v787 = vpop.trf.xlu0
      %v788 = vpop.trf.xlu0
      %v789 = vpop.trf.xlu0
      %v790 = vpop.trf.xlu0
      %v791 = vpop.trf.xlu0
      %vm792 = vcmask 64512
      %v794 = vsel %vm792, %v776, 0
      %v797 = vsel %vm792, %v777, 0
      %799 = vmatpush.msra.mxu0 0.0
      %800 = vmatpush.msra.mxu0 0.0
      %801 = vmatpush.msra.mxu0 0.0
      %802 = vmatpush.msra.mxu0 0.0
      %803 = vmatpush.msra.mxu0 0.0
      %804 = vmatpush.msra.mxu0 0.0
      %805 = vmatpush.msra.mxu0 0.0
      %806 = vmatpush.msra.mxu0 0.0
      %807 = vmatpush.msra.mxu0 0.0
      %808 = vmatpush.msra.mxu0 0.0
      %809 = vmatpush.msra.mxu0 0.0
      %810 = vmatpush.msra.mxu0 0.0
      %811 = vmatpush.msra.mxu0 0.0
      %812 = vmatpush.msra.mxu0 0.0
      %813 = vmatpush.msra.mxu0 0.0
      %814 = vmatpush.msra.mxu0 %v615
      %815 = vmatmul.f32.gmra.mxu0 %v794
      %v816 = vpop.f32.mrf.mxu0
      %v817 = vadd.f32 0.0, %v816
      %818 = vmatmul.f32.gmra.mxu0 %v797
      %v819 = vpop.f32.mrf.mxu0
      %v820 = vadd.f32 0.0, %v819
      %821 = vdwg.mxu0
      %822 = vmatpush.msra.mxu0 0.0
      %823 = vmatpush.msra.mxu0 0.0
      %824 = vmatpush.msra.mxu0 0.0
      %825 = vmatpush.msra.mxu0 0.0
      %826 = vmatpush.msra.mxu0 0.0
      %827 = vmatpush.msra.mxu0 0.0
      %828 = vmatpush.msra.mxu0 0.0
      %829 = vmatpush.msra.mxu0 0.0
      %830 = vmatpush.msra.mxu0 0.0
      %831 = vmatpush.msra.mxu0 0.0
      %832 = vmatpush.msra.mxu0 0.0
      %833 = vmatpush.msra.mxu0 0.0
      %834 = vmatpush.msra.mxu0 0.0
      %835 = vmatpush.msra.mxu0 0.0
      %836 = vmatpush.msra.mxu0 0.0
      %837 = vmatpush.msra.mxu0 %v644
      %838 = vmatmul.f32.gmra.mxu0 %v794
      %v839 = vpop.f32.mrf.mxu0
      %v840 = vadd.f32 0.0, %v839
      %841 = vmatmul.f32.gmra.mxu0 %v797
      %v842 = vpop.f32.mrf.mxu0
      %v843 = vadd.f32 0.0, %v842
      %844 = vdwg.mxu0
      %845 = vxpose.xlu0.b32.start [1/16] %v740, 128
      %846 = vxpose.xlu0.b32.cont [2/16] 0.0, 128
      %847 = vxpose.xlu0.b32.cont [3/16] 0.0, 128
      %848 = vxpose.xlu0.b32.cont [4/16] 0.0, 128
      %849 = vxpose.xlu0.b32.cont [5/16] 0.0, 128
      %850 = vxpose.xlu0.b32.cont [6/16] 0.0, 128
      %851 = vxpose.xlu0.b32.cont [7/16] 0.0, 128
      %852 = vxpose.xlu0.b32.cont [8/16] 0.0, 128
      %853 = vxpose.xlu0.b32.cont [9/16] 0.0, 128
      %854 = vxpose.xlu0.b32.cont [10/16] 0.0, 128
      %855 = vxpose.xlu0.b32.cont [11/16] 0.0, 128
      %856 = vxpose.xlu0.b32.cont [12/16] 0.0, 128
      %857 = vxpose.xlu0.b32.cont [13/16] 0.0, 128
      %858 = vxpose.xlu0.b32.cont [14/16] 0.0, 128
      %859 = vxpose.xlu0.b32.cont [15/16] 0.0, 128
      %860 = vxpose.xlu0.b32.end [16/16] 0.0, 128
      %v861 = vpop.trf.xlu0
      %v862 = vpop.trf.xlu0
      %v863 = vpop.trf.xlu0
      %v864 = vpop.trf.xlu0
      %v865 = vpop.trf.xlu0
      %v866 = vpop.trf.xlu0
      %v867 = vpop.trf.xlu0
      %v868 = vpop.trf.xlu0
      %v869 = vpop.trf.xlu0
      %v870 = vpop.trf.xlu0
      %v871 = vpop.trf.xlu0
      %v872 = vpop.trf.xlu0
      %v873 = vpop.trf.xlu0
      %v874 = vpop.trf.xlu0
      %v875 = vpop.trf.xlu0
      %v876 = vpop.trf.xlu0
      %v878 = vsel %vm792, %v861, 0
      %v881 = vsel %vm792, %v862, 0
      %883 = vmatpush.msra.mxu0 0.0
      %884 = vmatpush.msra.mxu0 0.0
      %885 = vmatpush.msra.mxu0 0.0
      %886 = vmatpush.msra.mxu0 0.0
      %887 = vmatpush.msra.mxu0 0.0
      %888 = vmatpush.msra.mxu0 0.0
      %889 = vmatpush.msra.mxu0 0.0
      %890 = vmatpush.msra.mxu0 0.0
      %891 = vmatpush.msra.mxu0 0.0
      %892 = vmatpush.msra.mxu0 0.0
      %893 = vmatpush.msra.mxu0 0.0
      %894 = vmatpush.msra.mxu0 0.0
      %895 = vmatpush.msra.mxu0 0.0
      %896 = vmatpush.msra.mxu0 0.0
      %897 = vmatpush.msra.mxu0 0.0
      %898 = vmatpush.msra.mxu0 %v618
      %899 = vmatmul.f32.gmra.mxu0 %v878
      %v900 = vpop.f32.mrf.mxu0
      %v901 = vadd.f32 0.0, %v900
      %902 = vmatmul.f32.gmra.mxu0 %v881
      %v903 = vpop.f32.mrf.mxu0
      %v904 = vadd.f32 0.0, %v903
      %905 = vdwg.mxu0
      %906 = vmatpush.msra.mxu0 0.0
      %907 = vmatpush.msra.mxu0 0.0
      %908 = vmatpush.msra.mxu0 0.0
      %909 = vmatpush.msra.mxu0 0.0
      %910 = vmatpush.msra.mxu0 0.0
      %911 = vmatpush.msra.mxu0 0.0
      %912 = vmatpush.msra.mxu0 0.0
      %913 = vmatpush.msra.mxu0 0.0
      %914 = vmatpush.msra.mxu0 0.0
      %915 = vmatpush.msra.mxu0 0.0
      %916 = vmatpush.msra.mxu0 0.0
      %917 = vmatpush.msra.mxu0 0.0
      %918 = vmatpush.msra.mxu0 0.0
      %919 = vmatpush.msra.mxu0 0.0
      %920 = vmatpush.msra.mxu0 0.0
      %921 = vmatpush.msra.mxu0 %v647
      %922 = vmatmul.f32.gmra.mxu0 %v878
      %v923 = vpop.f32.mrf.mxu0
      %v924 = vadd.f32 0.0, %v923
      %925 = vmatmul.f32.gmra.mxu0 %v881
      %v926 = vpop.f32.mrf.mxu0
      %v927 = vadd.f32 0.0, %v926
      %928 = vdwg.mxu0
      %929 = vxpose.xlu0.b32.start [1/16] %v743, 128
      %930 = vxpose.xlu0.b32.cont [2/16] 0.0, 128
      %931 = vxpose.xlu0.b32.cont [3/16] 0.0, 128
      %932 = vxpose.xlu0.b32.cont [4/16] 0.0, 128
      %933 = vxpose.xlu0.b32.cont [5/16] 0.0, 128
      %934 = vxpose.xlu0.b32.cont [6/16] 0.0, 128
      %935 = vxpose.xlu0.b32.cont [7/16] 0.0, 128
      %936 = vxpose.xlu0.b32.cont [8/16] 0.0, 128
      %937 = vxpose.xlu0.b32.cont [9/16] 0.0, 128
      %938 = vxpose.xlu0.b32.cont [10/16] 0.0, 128
      %939 = vxpose.xlu0.b32.cont [11/16] 0.0, 128
      %940 = vxpose.xlu0.b32.cont [12/16] 0.0, 128
      %941 = vxpose.xlu0.b32.cont [13/16] 0.0, 128
      %942 = vxpose.xlu0.b32.cont [14/16] 0.0, 128
      %943 = vxpose.xlu0.b32.cont [15/16] 0.0, 128
      %944 = vxpose.xlu0.b32.end [16/16] 0.0, 128
      %v945 = vpop.trf.xlu0
      %v946 = vpop.trf.xlu0
      %v947 = vpop.trf.xlu0
      %v948 = vpop.trf.xlu0
      %v949 = vpop.trf.xlu0
      %v950 = vpop.trf.xlu0
      %v951 = vpop.trf.xlu0
      %v952 = vpop.trf.xlu0
      %v953 = vpop.trf.xlu0
      %v954 = vpop.trf.xlu0
      %v955 = vpop.trf.xlu0
      %v956 = vpop.trf.xlu0
      %v957 = vpop.trf.xlu0
      %v958 = vpop.trf.xlu0
      %v959 = vpop.trf.xlu0
      %v960 = vpop.trf.xlu0
      %v962 = vsel %vm792, %v945, 0
      %v965 = vsel %vm792, %v946, 0
      %967 = vmatpush.msra.mxu0 0.0
      %968 = vmatpush.msra.mxu0 0.0
      %969 = vmatpush.msra.mxu0 0.0
      %970 = vmatpush.msra.mxu0 0.0
      %971 = vmatpush.msra.mxu0 0.0
      %972 = vmatpush.msra.mxu0 0.0
      %973 = vmatpush.msra.mxu0 0.0
      %974 = vmatpush.msra.mxu0 0.0
      %975 = vmatpush.msra.mxu0 0.0
      %976 = vmatpush.msra.mxu0 0.0
      %977 = vmatpush.msra.mxu0 0.0
      %978 = vmatpush.msra.mxu0 0.0
      %979 = vmatpush.msra.mxu0 0.0
      %980 = vmatpush.msra.mxu0 0.0
      %981 = vmatpush.msra.mxu0 0.0
      %982 = vmatpush.msra.mxu0 %v621
      %983 = vmatmul.f32.gmra.mxu0 %v962
      %v984 = vpop.f32.mrf.mxu0
      %v985 = vadd.f32 0.0, %v984
      %986 = vmatmul.f32.gmra.mxu0 %v965
      %v987 = vpop.f32.mrf.mxu0
      %v988 = vadd.f32 0.0, %v987
      %989 = vdwg.mxu0
      %990 = vmatpush.msra.mxu0 0.0
      %991 = vmatpush.msra.mxu0 0.0
      %992 = vmatpush.msra.mxu0 0.0
      %993 = vmatpush.msra.mxu0 0.0
      %994 = vmatpush.msra.mxu0 0.0
      %995 = vmatpush.msra.mxu0 0.0
      %996 = vmatpush.msra.mxu0 0.0
      %997 = vmatpush.msra.mxu0 0.0
      %998 = vmatpush.msra.mxu0 0.0
      %999 = vmatpush.msra.mxu0 0.0
      %1000 = vmatpush.msra.mxu0 0.0
      %1001 = vmatpush.msra.mxu0 0.0
      %1002 = vmatpush.msra.mxu0 0.0
      %1003 = vmatpush.msra.mxu0 0.0
      %1004 = vmatpush.msra.mxu0 0.0
      %1005 = vmatpush.msra.mxu0 %v650
      %1006 = vmatmul.f32.gmra.mxu0 %v962
      %v1007 = vpop.f32.mrf.mxu0
      %v1008 = vadd.f32 0.0, %v1007
      %1009 = vmatmul.f32.gmra.mxu0 %v965
      %v1010 = vpop.f32.mrf.mxu0
      %v1011 = vadd.f32 0.0, %v1010
      %1012 = vdwg.mxu0
      %1013 = vxpose.xlu0.b32.start [1/16] %v746, 128
      %1014 = vxpose.xlu0.b32.cont [2/16] 0.0, 128
      %1015 = vxpose.xlu0.b32.cont [3/16] 0.0, 128
      %1016 = vxpose.xlu0.b32.cont [4/16] 0.0, 128
      %1017 = vxpose.xlu0.b32.cont [5/16] 0.0, 128
      %1018 = vxpose.xlu0.b32.cont [6/16] 0.0, 128
      %1019 = vxpose.xlu0.b32.cont [7/16] 0.0, 128
      %1020 = vxpose.xlu0.b32.cont [8/16] 0.0, 128
      %1021 = vxpose.xlu0.b32.cont [9/16] 0.0, 128
      %1022 = vxpose.xlu0.b32.cont [10/16] 0.0, 128
      %1023 = vxpose.xlu0.b32.cont [11/16] 0.0, 128
      %1024 = vxpose.xlu0.b32.cont [12/16] 0.0, 128
      %1025 = vxpose.xlu0.b32.cont [13/16] 0.0, 128
      %1026 = vxpose.xlu0.b32.cont [14/16] 0.0, 128
      %1027 = vxpose.xlu0.b32.cont [15/16] 0.0, 128
      %1028 = vxpose.xlu0.b32.end [16/16] 0.0, 128
      %v1029 = vpop.trf.xlu0
      %v1030 = vpop.trf.xlu0
      %v1031 = vpop.trf.xlu0
      %v1032 = vpop.trf.xlu0
      %v1033 = vpop.trf.xlu0
      %v1034 = vpop.trf.xlu0
      %v1035 = vpop.trf.xlu0
      %v1036 = vpop.trf.xlu0
      %v1037 = vpop.trf.xlu0
      %v1038 = vpop.trf.xlu0
      %v1039 = vpop.trf.xlu0
      %v1040 = vpop.trf.xlu0
      %v1041 = vpop.trf.xlu0
      %v1042 = vpop.trf.xlu0
      %v1043 = vpop.trf.xlu0
      %v1044 = vpop.trf.xlu0
      %v1046 = vsel %vm792, %v1029, 0
      %v1049 = vsel %vm792, %v1030, 0
      %1051 = vmatpush.msra.mxu0 0.0
      %1052 = vmatpush.msra.mxu0 0.0
      %1053 = vmatpush.msra.mxu0 0.0
      %1054 = vmatpush.msra.mxu0 0.0
      %1055 = vmatpush.msra.mxu0 0.0
      %1056 = vmatpush.msra.mxu0 0.0
      %1057 = vmatpush.msra.mxu0 0.0
      %1058 = vmatpush.msra.mxu0 0.0
      %1059 = vmatpush.msra.mxu0 0.0
      %1060 = vmatpush.msra.mxu0 0.0
      %1061 = vmatpush.msra.mxu0 0.0
      %1062 = vmatpush.msra.mxu0 0.0
      %1063 = vmatpush.msra.mxu0 0.0
      %1064 = vmatpush.msra.mxu0 0.0
      %1065 = vmatpush.msra.mxu0 0.0
      %1066 = vmatpush.msra.mxu0 %v624
      %1067 = vmatmul.f32.gmra.mxu0 %v1046
      %v1068 = vpop.f32.mrf.mxu0
      %v1069 = vadd.f32 0.0, %v1068
      %1070 = vmatmul.f32.gmra.mxu0 %v1049
      %v1071 = vpop.f32.mrf.mxu0
      %v1072 = vadd.f32 0.0, %v1071
      %1073 = vdwg.mxu0
      %1074 = vmatpush.msra.mxu0 0.0
      %1075 = vmatpush.msra.mxu0 0.0
      %1076 = vmatpush.msra.mxu0 0.0
      %1077 = vmatpush.msra.mxu0 0.0
      %1078 = vmatpush.msra.mxu0 0.0
      %1079 = vmatpush.msra.mxu0 0.0
      %1080 = vmatpush.msra.mxu0 0.0
      %1081 = vmatpush.msra.mxu0 0.0
      %1082 = vmatpush.msra.mxu0 0.0
      %1083 = vmatpush.msra.mxu0 0.0
      %1084 = vmatpush.msra.mxu0 0.0
      %1085 = vmatpush.msra.mxu0 0.0
      %1086 = vmatpush.msra.mxu0 0.0
      %1087 = vmatpush.msra.mxu0 0.0
      %1088 = vmatpush.msra.mxu0 0.0
      %1089 = vmatpush.msra.mxu0 %v653
      %1090 = vmatmul.f32.gmra.mxu0 %v1046
      %v1091 = vpop.f32.mrf.mxu0
      %v1092 = vadd.f32 0.0, %v1091
      %1093 = vmatmul.f32.gmra.mxu0 %v1049
      %v1094 = vpop.f32.mrf.mxu0
      %v1095 = vadd.f32 0.0, %v1094
      %1096 = vdwg.mxu0
      %v1097 = vmax.f32 %v817, %v820
      %v1098 = vrot.slane %v1097, 4
      %v1099 = vmax.f32 %v1097, %v1098
      %v1100 = vrot.slane %v1099, 2
      %v1101 = vmax.f32 %v1099, %v1100
      %v1102 = vrot.slane %v1101, 1
      %v1103 = vmax.f32 %v1101, %v1102
      %v1104 = vmax.f32 %v840, %v843
      %v1105 = vrot.slane %v1104, 4
      %v1106 = vmax.f32 %v1104, %v1105
      %v1107 = vrot.slane %v1106, 2
      %v1108 = vmax.f32 %v1106, %v1107
      %v1109 = vrot.slane %v1108, 1
      %v1110 = vmax.f32 %v1108, %v1109
      %v1111 = vmax.f32 %v901, %v904
      %v1112 = vrot.slane %v1111, 4
      %v1113 = vmax.f32 %v1111, %v1112
      %v1114 = vrot.slane %v1113, 2
      %v1115 = vmax.f32 %v1113, %v1114
      %v1116 = vrot.slane %v1115, 1
      %v1117 = vmax.f32 %v1115, %v1116
      %v1118 = vmax.f32 %v924, %v927
      %v1119 = vrot.slane %v1118, 4
      %v1120 = vmax.f32 %v1118, %v1119
      %v1121 = vrot.slane %v1120, 2
      %v1122 = vmax.f32 %v1120, %v1121
      %v1123 = vrot.slane %v1122, 1
      %v1124 = vmax.f32 %v1122, %v1123
      %v1125 = vmax.f32 %v985, %v988
      %v1126 = vrot.slane %v1125, 4
      %v1127 = vmax.f32 %v1125, %v1126
      %v1128 = vrot.slane %v1127, 2
      %v1129 = vmax.f32 %v1127, %v1128
      %v1130 = vrot.slane %v1129, 1
      %v1131 = vmax.f32 %v1129, %v1130
      %v1132 = vmax.f32 %v1008, %v1011
      %v1133 = vrot.slane %v1132, 4
      %v1134 = vmax.f32 %v1132, %v1133
      %v1135 = vrot.slane %v1134, 2
      %v1136 = vmax.f32 %v1134, %v1135
      %v1137 = vrot.slane %v1136, 1
      %v1138 = vmax.f32 %v1136, %v1137
      %v1139 = vmax.f32 %v1069, %v1072
      %v1140 = vrot.slane %v1139, 4
      %v1141 = vmax.f32 %v1139, %v1140
      %v1142 = vrot.slane %v1141, 2
      %v1143 = vmax.f32 %v1141, %v1142
      %v1144 = vrot.slane %v1143, 1
      %v1145 = vmax.f32 %v1143, %v1144
      %v1146 = vmax.f32 %v1092, %v1095
      %v1147 = vrot.slane %v1146, 4
      %v1148 = vmax.f32 %v1146, %v1147
      %v1149 = vrot.slane %v1148, 2
      %v1150 = vmax.f32 %v1148, %v1149
      %v1151 = vrot.slane %v1150, 1
      %v1152 = vmax.f32 %v1150, %v1151
      %v1153 = vsub.f32 %v817, %v1103
      %v1154 = vsub.f32 %v840, %v1110
      %v1155 = vsub.f32 %v820, %v1103
      %v1156 = vsub.f32 %v843, %v1110
      %v1157 = vsub.f32 %v901, %v1117
      %v1158 = vsub.f32 %v924, %v1124
      %v1159 = vsub.f32 %v904, %v1117
      %v1160 = vsub.f32 %v927, %v1124
      %v1161 = vsub.f32 %v985, %v1131
      %v1162 = vsub.f32 %v1008, %v1138
      %v1163 = vsub.f32 %v988, %v1131
      %v1164 = vsub.f32 %v1011, %v1138
      %v1165 = vsub.f32 %v1069, %v1145
      %v1166 = vsub.f32 %v1092, %v1152
      %v1167 = vsub.f32 %v1072, %v1145
      %v1168 = vsub.f32 %v1095, %v1152
      %v1169 = vmul.f32 %v1153, 1.442695
      %v1170 = vpow.pop %v1169
      %v1171 = vmul.f32 %v1154, 1.442695
      %v1172 = vpow.pop %v1171
      %v1173 = vmul.f32 %v1155, 1.442695
      %v1174 = vpow.pop %v1173
      %v1175 = vmul.f32 %v1156, 1.442695
      %v1176 = vpow.pop %v1175
      %v1177 = vmul.f32 %v1157, 1.442695
      %v1178 = vpow.pop %v1177
      %v1179 = vmul.f32 %v1158, 1.442695
      %v1180 = vpow.pop %v1179
      %v1181 = vmul.f32 %v1159, 1.442695
      %v1182 = vpow.pop %v1181
      %v1183 = vmul.f32 %v1160, 1.442695
      %v1184 = vpow.pop %v1183
      %v1185 = vmul.f32 %v1161, 1.442695
      %v1186 = vpow.pop %v1185
      %v1187 = vmul.f32 %v1162, 1.442695
      %v1188 = vpow.pop %v1187
      %v1189 = vmul.f32 %v1163, 1.442695
      %v1190 = vpow.pop %v1189
      %v1191 = vmul.f32 %v1164, 1.442695
      %v1192 = vpow.pop %v1191
      %v1193 = vmul.f32 %v1165, 1.442695
      %v1194 = vpow.pop %v1193
      %v1195 = vmul.f32 %v1166, 1.442695
      %v1196 = vpow.pop %v1195
      %v1197 = vmul.f32 %v1167, 1.442695
      %v1198 = vpow.pop %v1197
      %v1199 = vmul.f32 %v1168, 1.442695
      %v1200 = vpow.pop %v1199
      %v1201 = vadd.f32 %v1170, %v1174
      %v1202 = vrot.slane %v1201, 4
      %v1203 = vadd.f32 %v1201, %v1202
      %v1204 = vrot.slane %v1203, 2
      %v1205 = vadd.f32 %v1203, %v1204
      %v1206 = vrot.slane %v1205, 1
      %v1207 = vadd.f32 %v1205, %v1206
      %v1208 = vadd.f32 %v1172, %v1176
      %v1209 = vrot.slane %v1208, 4
      %v1210 = vadd.f32 %v1208, %v1209
      %v1211 = vrot.slane %v1210, 2
      %v1212 = vadd.f32 %v1210, %v1211
      %v1213 = vrot.slane %v1212, 1
      %v1214 = vadd.f32 %v1212, %v1213
      %v1215 = vadd.f32 %v1178, %v1182
      %v1216 = vrot.slane %v1215, 4
      %v1217 = vadd.f32 %v1215, %v1216
      %v1218 = vrot.slane %v1217, 2
      %v1219 = vadd.f32 %v1217, %v1218
      %v1220 = vrot.slane %v1219, 1
      %v1221 = vadd.f32 %v1219, %v1220
      %v1222 = vadd.f32 %v1180, %v1184
      %v1223 = vrot.slane %v1222, 4
      %v1224 = vadd.f32 %v1222, %v1223
      %v1225 = vrot.slane %v1224, 2
      %v1226 = vadd.f32 %v1224, %v1225
      %v1227 = vrot.slane %v1226, 1
      %v1228 = vadd.f32 %v1226, %v1227
      %v1229 = vadd.f32 %v1186, %v1190
      %v1230 = vrot.slane %v1229, 4
      %v1231 = vadd.f32 %v1229, %v1230
      %v1232 = vrot.slane %v1231, 2
      %v1233 = vadd.f32 %v1231, %v1232
      %v1234 = vrot.slane %v1233, 1
      %v1235 = vadd.f32 %v1233, %v1234
      %v1236 = vadd.f32 %v1188, %v1192
      %v1237 = vrot.slane %v1236, 4
      %v1238 = vadd.f32 %v1236, %v1237
      %v1239 = vrot.slane %v1238, 2
      %v1240 = vadd.f32 %v1238, %v1239
      %v1241 = vrot.slane %v1240, 1
      %v1242 = vadd.f32 %v1240, %v1241
      %v1243 = vadd.f32 %v1194, %v1198
      %v1244 = vrot.slane %v1243, 4
      %v1245 = vadd.f32 %v1243, %v1244
      %v1246 = vrot.slane %v1245, 2
      %v1247 = vadd.f32 %v1245, %v1246
      %v1248 = vrot.slane %v1247, 1
      %v1249 = vadd.f32 %v1247, %v1248
      %v1250 = vadd.f32 %v1196, %v1200
      %v1251 = vrot.slane %v1250, 4
      %v1252 = vadd.f32 %v1250, %v1251
      %v1253 = vrot.slane %v1252, 2
      %v1254 = vadd.f32 %v1252, %v1253
      %v1255 = vrot.slane %v1254, 1
      %v1256 = vadd.f32 %v1254, %v1255
      %v1257 = vrcp.pop %v1207
      %v1258 = vmul.f32 %v1207, %v1257
      %v1259 = vsub.f32 1.0, %v1258
      %v1260 = vmul.f32 %v1257, %v1259
      %v1261 = vadd.f32 %v1257, %v1260
      %vm1262 = vweird.f32 %v1207
      %vm1263 = vweird.f32 %v1257
      %vm1264 = vmor %vm1262, %vm1263
      %v1265 = vsel %vm1264, %v1257, %v1261
      %v1266 = vand.u32 2147483647, %v1207
      %vm1267 = vcmp.eq.f32.partialorder %v1266, 8.507059e+37
      %v1268 = vand.u32 %v1207, 2147483648
      %v1269 = vor.u32 1.1754944e-38, %v1268
      %v1270 = vsel %vm1267, %v1269, %v1265
      %v1271 = vmul.f32 1.0, %v1270
      %v1272 = vrcp.pop %v1214
      %v1273 = vmul.f32 %v1214, %v1272
      %v1274 = vsub.f32 1.0, %v1273
      %v1275 = vmul.f32 %v1272, %v1274
      %v1276 = vadd.f32 %v1272, %v1275
      %vm1277 = vweird.f32 %v1214
      %vm1278 = vweird.f32 %v1272
      %vm1279 = vmor %vm1277, %vm1278
      %v1280 = vsel %vm1279, %v1272, %v1276
      %v1281 = vand.u32 2147483647, %v1214
      %vm1282 = vcmp.eq.f32.partialorder %v1281, 8.507059e+37
      %v1283 = vand.u32 %v1214, 2147483648
      %v1284 = vor.u32 1.1754944e-38, %v1283
      %v1285 = vsel %vm1282, %v1284, %v1280
      %v1286 = vmul.f32 1.0, %v1285
      %v1287 = vrcp.pop %v1221
      %v1288 = vmul.f32 %v1221, %v1287
      %v1289 = vsub.f32 1.0, %v1288
      %v1290 = vmul.f32 %v1287, %v1289
      %v1291 = vadd.f32 %v1287, %v1290
      %vm1292 = vweird.f32 %v1221
      %vm1293 = vweird.f32 %v1287
      %vm1294 = vmor %vm1292, %vm1293
      %v1295 = vsel %vm1294, %v1287, %v1291
      %v1296 = vand.u32 2147483647, %v1221
      %vm1297 = vcmp.eq.f32.partialorder %v1296, 8.507059e+37
      %v1298 = vand.u32 %v1221, 2147483648
      %v1299 = vor.u32 1.1754944e-38, %v1298
      %v1300 = vsel %vm1297, %v1299, %v1295
      %v1301 = vmul.f32 1.0, %v1300
      %v1302 = vrcp.pop %v1228
      %v1303 = vmul.f32 %v1228, %v1302
      %v1304 = vsub.f32 1.0, %v1303
      %v1305 = vmul.f32 %v1302, %v1304
      %v1306 = vadd.f32 %v1302, %v1305
      %vm1307 = vweird.f32 %v1228
      %vm1308 = vweird.f32 %v1302
      %vm1309 = vmor %vm1307, %vm1308
      %v1310 = vsel %vm1309, %v1302, %v1306
      %v1311 = vand.u32 2147483647, %v1228
      %vm1312 = vcmp.eq.f32.partialorder %v1311, 8.507059e+37
      %v1313 = vand.u32 %v1228, 2147483648
      %v1314 = vor.u32 1.1754944e-38, %v1313
      %v1315 = vsel %vm1312, %v1314, %v1310
      %v1316 = vmul.f32 1.0, %v1315
      %v1317 = vrcp.pop %v1235
      %v1318 = vmul.f32 %v1235, %v1317
      %v1319 = vsub.f32 1.0, %v1318
      %v1320 = vmul.f32 %v1317, %v1319
      %v1321 = vadd.f32 %v1317, %v1320
      %vm1322 = vweird.f32 %v1235
      %vm1323 = vweird.f32 %v1317
      %vm1324 = vmor %vm1322, %vm1323
      %v1325 = vsel %vm1324, %v1317, %v1321
      %v1326 = vand.u32 2147483647, %v1235
      %vm1327 = vcmp.eq.f32.partialorder %v1326, 8.507059e+37
      %v1328 = vand.u32 %v1235, 2147483648
      %v1329 = vor.u32 1.1754944e-38, %v1328
      %v1330 = vsel %vm1327, %v1329, %v1325
      %v1331 = vmul.f32 1.0, %v1330
      %v1332 = vrcp.pop %v1242
      %v1333 = vmul.f32 %v1242, %v1332
      %v1334 = vsub.f32 1.0, %v1333
      %v1335 = vmul.f32 %v1332, %v1334
      %v1336 = vadd.f32 %v1332, %v1335
      %vm1337 = vweird.f32 %v1242
      %vm1338 = vweird.f32 %v1332
      %vm1339 = vmor %vm1337, %vm1338
      %v1340 = vsel %vm1339, %v1332, %v1336
      %v1341 = vand.u32 2147483647, %v1242
      %vm1342 = vcmp.eq.f32.partialorder %v1341, 8.507059e+37
      %v1343 = vand.u32 %v1242, 2147483648
      %v1344 = vor.u32 1.1754944e-38, %v1343
      %v1345 = vsel %vm1342, %v1344, %v1340
      %v1346 = vmul.f32 1.0, %v1345
      %v1347 = vrcp.pop %v1249
      %v1348 = vmul.f32 %v1249, %v1347
      %v1349 = vsub.f32 1.0, %v1348
      %v1350 = vmul.f32 %v1347, %v1349
      %v1351 = vadd.f32 %v1347, %v1350
      %vm1352 = vweird.f32 %v1249
      %vm1353 = vweird.f32 %v1347
      %vm1354 = vmor %vm1352, %vm1353
      %v1355 = vsel %vm1354, %v1347, %v1351
      %v1356 = vand.u32 2147483647, %v1249
      %vm1357 = vcmp.eq.f32.partialorder %v1356, 8.507059e+37
      %v1358 = vand.u32 %v1249, 2147483648
      %v1359 = vor.u32 1.1754944e-38, %v1358
      %v1360 = vsel %vm1357, %v1359, %v1355
      %v1361 = vmul.f32 1.0, %v1360
      %v1362 = vrcp.pop %v1256
      %v1363 = vmul.f32 %v1256, %v1362
      %v1364 = vsub.f32 1.0, %v1363
      %v1365 = vmul.f32 %v1362, %v1364
      %v1366 = vadd.f32 %v1362, %v1365
      %vm1367 = vweird.f32 %v1256
      %vm1368 = vweird.f32 %v1362
      %vm1369 = vmor %vm1367, %vm1368
      %v1370 = vsel %vm1369, %v1362, %v1366
      %v1371 = vand.u32 2147483647, %v1256
      %vm1372 = vcmp.eq.f32.partialorder %v1371, 8.507059e+37
      %v1373 = vand.u32 %v1256, 2147483648
      %v1374 = vor.u32 1.1754944e-38, %v1373
      %v1375 = vsel %vm1372, %v1374, %v1370
      %v1376 = vmul.f32 1.0, %v1375
      %v1377 = vmul.f32 %v1170, %v1271
      %v1378 = vmul.f32 %v1172, %v1286
      %v1379 = vmul.f32 %v1174, %v1271
      %v1380 = vmul.f32 %v1176, %v1286
      %v1381 = vmul.f32 %v1178, %v1301
      %v1382 = vmul.f32 %v1180, %v1316
      %v1383 = vmul.f32 %v1182, %v1301
      %v1384 = vmul.f32 %v1184, %v1316
      %v1385 = vmul.f32 %v1186, %v1331
      %v1386 = vmul.f32 %v1188, %v1346
      %v1387 = vmul.f32 %v1190, %v1331
      %v1388 = vmul.f32 %v1192, %v1346
      %v1389 = vmul.f32 %v1194, %v1361
      %v1390 = vmul.f32 %v1196, %v1376
      %v1391 = vmul.f32 %v1198, %v1361
      %v1392 = vmul.f32 %v1200, %v1376
      %v1394 = vsel %vm441, %v749, 0
      %1396 = vmatpush.msra.mxu0 0.0
      %1397 = vmatpush.msra.mxu0 0.0
      %1398 = vmatpush.msra.mxu0 0.0
      %1399 = vmatpush.msra.mxu0 0.0
      %1400 = vmatpush.msra.mxu0 0.0
      %1401 = vmatpush.msra.mxu0 0.0
      %1402 = vmatpush.msra.mxu0 0.0
      %1403 = vmatpush.msra.mxu0 0.0
      %1404 = vmatpush.msra.mxu0 0.0
      %1405 = vmatpush.msra.mxu0 0.0
      %1406 = vmatpush.msra.mxu0 0.0
      %1407 = vmatpush.msra.mxu0 0.0
      %1408 = vmatpush.msra.mxu0 0.0
      %1409 = vmatpush.msra.mxu0 0.0
      %1410 = vmatpush.msra.mxu0 %v1379
      %1411 = vmatpush.msra.mxu0 %v1377
      %1412 = vmatmul.f32.gmra.mxu0 %v1394
      %v1413 = vpop.f32.mrf.mxu0
      %v1414 = vadd.f32 0.0, %v1413
      %1415 = vdwg.mxu0
      %1416 = vmatpush.msra.mxu0 0.0
      %1417 = vmatpush.msra.mxu0 0.0
      %1418 = vmatpush.msra.mxu0 0.0
      %1419 = vmatpush.msra.mxu0 0.0
      %1420 = vmatpush.msra.mxu0 0.0
      %1421 = vmatpush.msra.mxu0 0.0
      %1422 = vmatpush.msra.mxu0 0.0
      %1423 = vmatpush.msra.mxu0 0.0
      %1424 = vmatpush.msra.mxu0 0.0
      %1425 = vmatpush.msra.mxu0 0.0
      %1426 = vmatpush.msra.mxu0 0.0
      %1427 = vmatpush.msra.mxu0 0.0
      %1428 = vmatpush.msra.mxu0 0.0
      %1429 = vmatpush.msra.mxu0 0.0
      %1430 = vmatpush.msra.mxu0 %v1380
      %1431 = vmatpush.msra.mxu0 %v1378
      %1432 = vmatmul.f32.gmra.mxu0 %v1394
      %v1433 = vpop.f32.mrf.mxu0
      %v1434 = vadd.f32 0.0, %v1433
      %1435 = vdwg.mxu0
      %v1437 = vsel %vm441, %v752, 0
      %1439 = vmatpush.msra.mxu0 0.0
      %1440 = vmatpush.msra.mxu0 0.0
      %1441 = vmatpush.msra.mxu0 0.0
      %1442 = vmatpush.msra.mxu0 0.0
      %1443 = vmatpush.msra.mxu0 0.0
      %1444 = vmatpush.msra.mxu0 0.0
      %1445 = vmatpush.msra.mxu0 0.0
      %1446 = vmatpush.msra.mxu0 0.0
      %1447 = vmatpush.msra.mxu0 0.0
      %1448 = vmatpush.msra.mxu0 0.0
      %1449 = vmatpush.msra.mxu0 0.0
      %1450 = vmatpush.msra.mxu0 0.0
      %1451 = vmatpush.msra.mxu0 0.0
      %1452 = vmatpush.msra.mxu0 0.0
      %1453 = vmatpush.msra.mxu0 %v1383
      %1454 = vmatpush.msra.mxu0 %v1381
      %1455 = vmatmul.f32.gmra.mxu0 %v1437
      %v1456 = vpop.f32.mrf.mxu0
      %v1457 = vadd.f32 0.0, %v1456
      %1458 = vdwg.mxu0
      %1459 = vmatpush.msra.mxu0 0.0
      %1460 = vmatpush.msra.mxu0 0.0
      %1461 = vmatpush.msra.mxu0 0.0
      %1462 = vmatpush.msra.mxu0 0.0
      %1463 = vmatpush.msra.mxu0 0.0
      %1464 = vmatpush.msra.mxu0 0.0
      %1465 = vmatpush.msra.mxu0 0.0
      %1466 = vmatpush.msra.mxu0 0.0
      %1467 = vmatpush.msra.mxu0 0.0
      %1468 = vmatpush.msra.mxu0 0.0
      %1469 = vmatpush.msra.mxu0 0.0
      %1470 = vmatpush.msra.mxu0 0.0
      %1471 = vmatpush.msra.mxu0 0.0
      %1472 = vmatpush.msra.mxu0 0.0
      %1473 = vmatpush.msra.mxu0 %v1384
      %1474 = vmatpush.msra.mxu0 %v1382
      %1475 = vmatmul.f32.gmra.mxu0 %v1437
      %v1476 = vpop.f32.mrf.mxu0
      %v1477 = vadd.f32 0.0, %v1476
      %1478 = vdwg.mxu0
      %v1480 = vsel %vm441, %v755, 0
      %1482 = vmatpush.msra.mxu0 0.0
      %1483 = vmatpush.msra.mxu0 0.0
      %1484 = vmatpush.msra.mxu0 0.0
      %1485 = vmatpush.msra.mxu0 0.0
      %1486 = vmatpush.msra.mxu0 0.0
      %1487 = vmatpush.msra.mxu0 0.0
      %1488 = vmatpush.msra.mxu0 0.0
      %1489 = vmatpush.msra.mxu0 0.0
      %1490 = vmatpush.msra.mxu0 0.0
      %1491 = vmatpush.msra.mxu0 0.0
      %1492 = vmatpush.msra.mxu0 0.0
      %1493 = vmatpush.msra.mxu0 0.0
      %1494 = vmatpush.msra.mxu0 0.0
      %1495 = vmatpush.msra.mxu0 0.0
      %1496 = vmatpush.msra.mxu0 %v1387
      %1497 = vmatpush.msra.mxu0 %v1385
      %1498 = vmatmul.f32.gmra.mxu0 %v1480
      %v1499 = vpop.f32.mrf.mxu0
      %v1500 = vadd.f32 0.0, %v1499
      %1501 = vdwg.mxu0
      %1502 = vmatpush.msra.mxu0 0.0
      %1503 = vmatpush.msra.mxu0 0.0
      %1504 = vmatpush.msra.mxu0 0.0
      %1505 = vmatpush.msra.mxu0 0.0
      %1506 = vmatpush.msra.mxu0 0.0
      %1507 = vmatpush.msra.mxu0 0.0
      %1508 = vmatpush.msra.mxu0 0.0
      %1509 = vmatpush.msra.mxu0 0.0
      %1510 = vmatpush.msra.mxu0 0.0
      %1511 = vmatpush.msra.mxu0 0.0
      %1512 = vmatpush.msra.mxu0 0.0
      %1513 = vmatpush.msra.mxu0 0.0
      %1514 = vmatpush.msra.mxu0 0.0
      %1515 = vmatpush.msra.mxu0 0.0
      %1516 = vmatpush.msra.mxu0 %v1388
      %1517 = vmatpush.msra.mxu0 %v1386
      %1518 = vmatmul.f32.gmra.mxu0 %v1480
      %v1519 = vpop.f32.mrf.mxu0
      %v1520 = vadd.f32 0.0, %v1519
      %1521 = vdwg.mxu0
      %v1523 = vsel %vm441, %v758, 0
      %1525 = vmatpush.msra.mxu0 0.0
      %1526 = vmatpush.msra.mxu0 0.0
      %1527 = vmatpush.msra.mxu0 0.0
      %1528 = vmatpush.msra.mxu0 0.0
      %1529 = vmatpush.msra.mxu0 0.0
      %1530 = vmatpush.msra.mxu0 0.0
      %1531 = vmatpush.msra.mxu0 0.0
      %1532 = vmatpush.msra.mxu0 0.0
      %1533 = vmatpush.msra.mxu0 0.0
      %1534 = vmatpush.msra.mxu0 0.0
      %1535 = vmatpush.msra.mxu0 0.0
      %1536 = vmatpush.msra.mxu0 0.0
      %1537 = vmatpush.msra.mxu0 0.0
      %1538 = vmatpush.msra.mxu0 0.0
      %1539 = vmatpush.msra.mxu0 %v1391
      %1540 = vmatpush.msra.mxu0 %v1389
      %1541 = vmatmul.f32.gmra.mxu0 %v1523
      %v1542 = vpop.f32.mrf.mxu0
      %v1543 = vadd.f32 0.0, %v1542
      %1544 = vdwg.mxu0
      %1545 = vmatpush.msra.mxu0 0.0
      %1546 = vmatpush.msra.mxu0 0.0
      %1547 = vmatpush.msra.mxu0 0.0
      %1548 = vmatpush.msra.mxu0 0.0
      %1549 = vmatpush.msra.mxu0 0.0
      %1550 = vmatpush.msra.mxu0 0.0
      %1551 = vmatpush.msra.mxu0 0.0
      %1552 = vmatpush.msra.mxu0 0.0
      %1553 = vmatpush.msra.mxu0 0.0
      %1554 = vmatpush.msra.mxu0 0.0
      %1555 = vmatpush.msra.mxu0 0.0
      %1556 = vmatpush.msra.mxu0 0.0
      %1557 = vmatpush.msra.mxu0 0.0
      %1558 = vmatpush.msra.mxu0 0.0
      %1559 = vmatpush.msra.mxu0 %v1392
      %1560 = vmatpush.msra.mxu0 %v1390
      %1561 = vmatmul.f32.gmra.mxu0 %v1523
      %v1562 = vpop.f32.mrf.mxu0
      %v1563 = vadd.f32 0.0, %v1562
      %1564 = vdwg.mxu0
      %1566 = vset.pattern.permute.xlu0 0
      %1567 = vperm.xlu0 %1566, %v285
      %v1568 = vpop.permute.xlu0 %1567
      %1571 = vset.pattern.permute.xlu0 0
      %1572 = vperm.xlu0 %1571, %v286
      %v1573 = vpop.permute.xlu0 %1572
      %1576 = vset.pattern.permute.xlu0 0
      %1577 = vperm.xlu0 %1576, %v287
      %v1578 = vpop.permute.xlu0 %1577
      %1581 = vset.pattern.permute.xlu0 0
      %1582 = vperm.xlu0 %1581, %v288
      %v1583 = vpop.permute.xlu0 %1582
      %v1586 = vsel %vm584, %v560, 0
      %v1589 = vsel %vm584, %v561, 0
      %v1592 = vsel %vm584, %v562, 0
      %v1595 = vsel %vm584, %v563, 0
      %1597 = vmatpush.msra.mxu0 0.0
      %1598 = vmatpush.msra.mxu0 0.0
      %1599 = vmatpush.msra.mxu0 0.0
      %1600 = vmatpush.msra.mxu0 0.0
      %1601 = vmatpush.msra.mxu0 0.0
      %1602 = vmatpush.msra.mxu0 0.0
      %1603 = vmatpush.msra.mxu0 0.0
      %1604 = vmatpush.msra.mxu0 0.0
      %1605 = vmatpush.msra.mxu0 0.0
      %1606 = vmatpush.msra.mxu0 0.0
      %1607 = vmatpush.msra.mxu0 0.0
      %1608 = vmatpush.msra.mxu0 0.0
      %1609 = vmatpush.msra.mxu0 %v1543
      %1610 = vmatpush.msra.mxu0 %v1500
      %1611 = vmatpush.msra.mxu0 %v1457
      %1612 = vmatpush.msra.mxu0 %v1414
      %1613 = vmatmul.f32.gmra.mxu0 %v1586
      %v1614 = vpop.f32.mrf.mxu0
      %v1615 = vadd.f32 %v1568, %v1614
      %1616 = vmatmul.f32.gmra.mxu0 %v1589
      %v1617 = vpop.f32.mrf.mxu0
      %v1618 = vadd.f32 %v1573, %v1617
      %1619 = vmatmul.f32.gmra.mxu0 %v1592
      %v1620 = vpop.f32.mrf.mxu0
      %v1621 = vadd.f32 %v1578, %v1620
      %1622 = vmatmul.f32.gmra.mxu0 %v1595
      %v1623 = vpop.f32.mrf.mxu0
      %v1624 = vadd.f32 %v1583, %v1623
      %1625 = vdwg.mxu0
      %1626 = vmatpush.msra.mxu0 0.0
      %1627 = vmatpush.msra.mxu0 0.0
      %1628 = vmatpush.msra.mxu0 0.0
      %1629 = vmatpush.msra.mxu0 0.0
      %1630 = vmatpush.msra.mxu0 0.0
      %1631 = vmatpush.msra.mxu0 0.0
      %1632 = vmatpush.msra.mxu0 0.0
      %1633 = vmatpush.msra.mxu0 0.0
      %1634 = vmatpush.msra.mxu0 0.0
      %1635 = vmatpush.msra.mxu0 0.0
      %1636 = vmatpush.msra.mxu0 0.0
      %1637 = vmatpush.msra.mxu0 0.0
      %1638 = vmatpush.msra.mxu0 %v1563
      %1639 = vmatpush.msra.mxu0 %v1520
      %1640 = vmatpush.msra.mxu0 %v1477
      %1641 = vmatpush.msra.mxu0 %v1434
      %1642 = vmatmul.f32.gmra.mxu0 %v1586
      %v1643 = vpop.f32.mrf.mxu0
      %v1644 = vadd.f32 %v1568, %v1643
      %1645 = vmatmul.f32.gmra.mxu0 %v1589
      %v1646 = vpop.f32.mrf.mxu0
      %v1647 = vadd.f32 %v1573, %v1646
      %1648 = vmatmul.f32.gmra.mxu0 %v1592
      %v1649 = vpop.f32.mrf.mxu0
      %v1650 = vadd.f32 %v1578, %v1649
      %1651 = vmatmul.f32.gmra.mxu0 %v1595
      %v1652 = vpop.f32.mrf.mxu0
      %v1653 = vadd.f32 %v1583, %v1652
      %1654 = vdwg.mxu0
      %1655 = vst [vmem:[%s244] sm:$0xff] %v1615
      %1656 = vst [vmem:[%s244 + $0x8] sm:$0xff] %v1644
      %1657 = vst [vmem:[%s244 + $0x10] sm:$0xff] %v1618
      %1658 = vst [vmem:[%s244 + $0x18] sm:$0xff] %v1647
      %1659 = vst [vmem:[%s244 + $0x20] sm:$0xff] %v1621
      %1660 = vst [vmem:[%s244 + $0x28] sm:$0xff] %v1650
      %1661 = vst [vmem:[%s244 + $0x30] sm:$0xff] %v1624
      %1662 = vst [vmem:[%s244 + $0x38] sm:$0xff] %v1653
      %p1663 = scmp.lt.s32.totalorder %s16, 1
      %s1664 = scalar_select %p1663, %s16, 1
      %s1665 = smul.addr %s1664, 8
      %s1666 = smul.addr %s1665, 8
      %s1667 = scalar_lea.vmem %s5, %s1666
      // Predicated region
      $region41: #{efficient_self_attention.1} parent=39 // pred_check
        %p1668 = pneg %p149
      $region42: #{efficient_self_attention.1} parent=39 // pred_check_branch
        %1670 = sbr.rel (%p1668) target = $region44
      $region43: #{efficient_self_attention.1} parent=39 // pred_region
        _
      $region44: #{efficient_self_attention.1} parent=39 // pred_fallthru
        _
    $region40: #{efficient_self_attention.1} parent=5 // pred_fallthru
      _
    %p1671 = scmp.le.s32.totalorder 2, %s11
    // Predicated region
    $region45: #{efficient_self_attention.1} parent=5 // pred_check
      %p1672 = pneg %p1671
    $region46: #{efficient_self_attention.1} parent=5 // pred_check_branch
      %1674 = sbr.rel (%p1672) target = $region48
    $region47: #{efficient_self_attention.1} parent=5 // pred_region
      %s1675 = ssub.s32 %s11, 2
      // Predicated region
      $region49: #{efficient_self_attention.1} parent=47 // pred_check
        %p1676 = pneg %p155
      $region50: #{efficient_self_attention.1} parent=47 // pred_check_branch
        %1678 = sbr.rel (%p1676) target = $region52
      $region51: #{efficient_self_attention.1} parent=47 // pred_region
        %p1679 = scmp.lt.s32.totalorder %s17, 1
        %s1680 = scalar_select %p1679, %s17, 1
        %s1681 = smul.addr %s1680, 8
        %s1682 = smul.addr %s1681, 8
        %s1683 = scalar_lea.vmem %s5, %s1682
      $region52: #{efficient_self_attention.1} parent=47 // pred_fallthru
        _
    $region48: #{efficient_self_attention.1} parent=5 // pred_fallthru
      _
  $region6: #{efficient_self_attention.1} parent=0 // loop_footer
    %s15 = sadd.s32 1, %s11
  $region7: #{efficient_self_attention.1} parent=0 // loop_footer_branch
    %10 = sbr.rel target = $region3
  $region8: #{efficient_self_attention.1} parent=0 // loop_exit
    _

</llo_original>
